<compile_context>
chip_gen: v5e
topology: v5e:2x2
jax: 0.10.0
libtpu: 0.0.40
codegen_flags: <defaults>
</compile_context>

<pallas_src>
import functools

import jax
import jax.numpy as jnp
from jax.experimental import pallas as pl
from jax.experimental.pallas import tpu as pltpu

BN_EPS = 1e-5
N_CLASSES = 3
VMEM_LIMIT = 32 * 1024 * 1024      # valid scoped-VMEM budget on v5e/v6e/v7x


def _round_up(x, m):
    return ((x + m - 1) // m) * m


def _pick_tile_m(M, cap=2048):
    """Large M tiles (these kernels are mem-bound; v5e scoped VMEM tolerates
    far more than 512 rows), but always >=2 grid steps when M > 128 so v7x's
    two TensorCores both get work via the 'parallel' grid axis."""
    if M <= 128:
        return M
    tm = min(cap, _round_up(pl.cdiv(M, 2), 8))
    return min(tm, M)


def _pick_tile_b(B, cap=128):
    """Batch tile for the fused tail; cap sized for v7x's 64 MiB VMEM."""
    if B <= 16:
        return B
    bm = min(cap, _round_up(pl.cdiv(B, 2), 8))
    return min(bm, B)


# ---------------------------------------------------------------------------
# Kernel 1: fused  out = relu( X @ W + shift )   (BN scale pre-folded into W)
# Used for conv1 and conv2 (im2col patches as LHS, dense K, dense Cout).
# ---------------------------------------------------------------------------
def _matmul_bias_act_kernel(x_ref, w_ref, b_ref, o_ref, *, apply_relu):
    y = jnp.dot(x_ref[...], w_ref[...], preferred_element_type=jnp.float32)
    y = y + b_ref[...]
    if apply_relu:
        y = jnp.maximum(y, 0.0)
    o_ref[...] = y.astype(o_ref.dtype)


def matmul_bias_act(x, w, bias, *, apply_relu, out_dtype):
    """x: (M, K) bf16, w: (K, N) bf16, bias: (1, N) f32 -> (M, N)."""
    M, K = x.shape
    K2, N = w.shape
    assert K == K2 and bias.shape == (1, N)
    tm = _pick_tile_m(M)
    grid_m = pl.cdiv(M, tm)
    cost = pl.CostEstimate(
        flops=2 * M * K * N,
        transcendentals=0,
        bytes_accessed=(M * K + K * N + M * N) * 2 + N * 4,
    )
    kernel = functools.partial(_matmul_bias_act_kernel, apply_relu=apply_relu)
    return pl.pallas_call(
        kernel,
        out_shape=jax.ShapeDtypeStruct((M, N), out_dtype),
        grid=(grid_m,),
        in_specs=[
            pl.BlockSpec((tm, K), lambda i: (i, 0)),
            pl.BlockSpec((K, N), lambda i: (0, 0)),
            pl.BlockSpec((1, N), lambda i: (0, 0)),
        ],
        out_specs=pl.BlockSpec((tm, N), lambda i: (i, 0)),
        compiler_params=pltpu.CompilerParams(
            dimension_semantics=("parallel",), vmem_limit_bytes=VMEM_LIMIT),
        cost_estimate=cost,
    )(x, w, bias)


# ---------------------------------------------------------------------------
# Kernel 2: fused tail = conv3 + conv4 (+BN+ReLU) + NCHW-flatten + mlp1 + mlp2
# Input: conv3 im2col patches in position-major layout (16, B, 288).
# conv4's im2col and the flatten are built in-kernel from static slices; the
# PyTorch NCHW .view(B,-1) ordering is absorbed into the mlp1 weight layout.
# ---------------------------------------------------------------------------
def _tail_kernel(p3_ref, w3_ref, s3_ref, w4_ref, s4_ref,
                 w1_ref, b1_ref, w2_ref, b2_ref, o_ref):
    w3 = w3_ref[...]          # (288, 64) bf16
    s3 = s3_ref[...]          # (1, 64)   f32
    w4 = w4_ref[...]          # (256, 64) bf16
    s4 = s4_ref[...]          # (1, 64)   f32

    h4_blocks = []
    for oh in range(2):                      # conv4 output position p = oh*2+ow
        for ow in range(2):
            taps = []
            for di in range(2):              # 2x2 conv4 window over conv3's 4x4 grid
                for dj in range(2):
                    s = (2 * oh + di) * 4 + (2 * ow + dj)
                    h3 = jnp.dot(p3_ref[s], w3,
                                 preferred_element_type=jnp.float32)
                    h3 = jnp.maximum(h3 + s3, 0.0)           # conv3 BN shift + ReLU
                    taps.append(h3.astype(jnp.bfloat16))
            patch4 = jnp.concatenate(taps, axis=-1)          # (bm, 256) conv4 im2col
            h4 = jnp.dot(patch4, w4, preferred_element_type=jnp.float32)
            h4_blocks.append(jnp.maximum(h4 + s4, 0.0))      # (bm, 64) f32
    feat = jnp.concatenate(h4_blocks, axis=-1)               # (bm, 256), flatten folded into w1
    # mlp1/mlp2 in f32 (tiny) -> single K=256 / K=128 contractions.
    y1 = jnp.dot(feat, w1_ref[...], preferred_element_type=jnp.float32) + b1_ref[...]
    y2 = jnp.dot(y1, w2_ref[...], preferred_element_type=jnp.float32) + b2_ref[...]
    o_ref[...] = y2.astype(o_ref.dtype)


def tail_fused(p3, w3, s3, w4, s4, w1, b1, w2, b2):
    """p3: (16, B, 288) bf16 conv3 patches, position-major. Returns (B, 128) f32."""
    S, B, K3 = p3.shape
    assert S == 16
    bm = _pick_tile_b(B)
    grid_b = pl.cdiv(B, bm)
    flops = B * 2 * (16 * K3 * 64 + 4 * 256 * 64 + 256 * 128 + 128 * 128)
    cost = pl.CostEstimate(
        flops=flops,
        transcendentals=0,
        bytes_accessed=B * (16 * K3 * 2 + 128 * 4) + 300_000,
    )
    return pl.pallas_call(
        _tail_kernel,
        out_shape=jax.ShapeDtypeStruct((B, 128), jnp.float32),
        grid=(grid_b,),
        in_specs=[
            pl.BlockSpec((S, bm, K3), lambda i: (0, i, 0)),
            pl.BlockSpec((K3, 64), lambda i: (0, 0)),
            pl.BlockSpec((1, 64), lambda i: (0, 0)),
            pl.BlockSpec((256, 64), lambda i: (0, 0)),
            pl.BlockSpec((1, 64), lambda i: (0, 0)),
            pl.BlockSpec((256, 128), lambda i: (0, 0)),
            pl.BlockSpec((1, 128), lambda i: (0, 0)),
            pl.BlockSpec((128, 128), lambda i: (0, 0)),
            pl.BlockSpec((1, 128), lambda i: (0, 0)),
        ],
        out_specs=pl.BlockSpec((bm, 128), lambda i: (i, 0)),
        compiler_params=pltpu.CompilerParams(
            dimension_semantics=("parallel",), vmem_limit_bytes=VMEM_LIMIT),
        cost_estimate=cost,
    )(p3, w3, s3, w4, s4, w1, b1, w2, b2)


# ---------------------------------------------------------------------------
# XLA glue (layout only): dense im2col (no zero-lane inflation)
# ---------------------------------------------------------------------------
def im2col_dense(x_nhwc, k, stride, pad):
    B, H, W, C = x_nhwc.shape
    OH = (H + 2 * pad - k) // stride + 1
    OW = (W + 2 * pad - k) // stride + 1
    xp = jnp.pad(x_nhwc, ((0, 0), (pad, pad), (pad, pad), (0, 0)))
    cols = [xp[:, i:i + stride * OH:stride, j:j + stride * OW:stride, :]
            for i in range(k) for j in range(k)]
    return jnp.concatenate(cols, axis=-1), OH, OW    # (B, OH, OW, k*k*C)


def conv_layer(x_nhwc, w_mat, shift, *, k, stride, pad, k_pad=None):
    B = x_nhwc.shape[0]
    patches, OH, OW = im2col_dense(x_nhwc, k, stride, pad)
    Kd = patches.shape[-1]
    patches = patches.reshape(B * OH * OW, Kd)
    if k_pad is not None and k_pad > Kd:
        patches = jnp.pad(patches, ((0, 0), (0, k_pad - Kd)))
    cout = w_mat.shape[1]
    out = matmul_bias_act(patches.astype(jnp.bfloat16), w_mat, shift,
                          apply_relu=True, out_dtype=jnp.bfloat16)
    return out.reshape(B, OH, OW, cout)


def conv3_patches_posmajor(x2):
    """conv2 output (B,7,7,32) -> conv3 im2col patches (16, B, 288), position-major."""
    patches, OH, OW = im2col_dense(x2, 3, 2, 1)      # (B, 4, 4, 288)
    B = x2.shape[0]
    return jnp.transpose(patches.reshape(B, OH * OW, 9 * 32), (1, 0, 2))


# ---------------------------------------------------------------------------
# Parameter folding (done once, outside the jitted forward)
# ---------------------------------------------------------------------------
def fold_conv_bn(c, k_pad=None, eps=BN_EPS):
    """Fold eval-mode BN into conv weights; dense (kh*kw*cin, cout) layout."""
    w, b = c["w"], c["b"]
    cout, cin, kh, kw = w.shape
    scale = c["gamma"] * jax.lax.rsqrt(c["rvar"] + eps)
    shift = c["beta"] + (b - c["rmean"]) * scale
    w_r = jnp.transpose(w, (2, 3, 1, 0)) * scale                   # (kh,kw,cin,cout)
    w_mat = w_r.reshape(kh * kw * cin, cout)
    if k_pad is not None and k_pad > w_mat.shape[0]:
        w_mat = jnp.pad(w_mat, ((0, k_pad - w_mat.shape[0]), (0, 0)))
    return w_mat.astype(jnp.bfloat16), shift.reshape(1, cout).astype(jnp.float32)


def prepare_params(params):
    prep = {
        "conv1": fold_conv_bn(params["conv1"], k_pad=16),   # K: 9 -> 16 (not 128)
        "conv2": fold_conv_bn(params["conv2"]),              # K = 144 dense
        "conv3": fold_conv_bn(params["conv3"]),              # K = 288 dense
        "conv4": fold_conv_bn(params["conv4"]),              # K = 256 dense
    }
    # mlp1: absorb PyTorch's NCHW .view(B,-1) ordering (flat = c*4 + pos) into
    # the weight rows; the kernel builds features as pos*64 + c.
    w1, b1 = params["mlp1"]["w"], params["mlp1"]["b"]        # (100, 256), (100,)
    f1 = w1.shape[0]
    w1_cat = jnp.transpose(w1.reshape(f1, 64, 4), (2, 1, 0)).reshape(256, f1)
    w1_pad = jnp.zeros((256, 128), jnp.float32).at[:, :f1].set(w1_cat)
    b1_row = jnp.zeros((1, 128), jnp.float32).at[0, :f1].set(b1)
    w2, b2 = params["mlp2"]["w"], params["mlp2"]["b"]        # (3, 100), (3,)
    w2_pad = jnp.zeros((128, 128), jnp.float32).at[:f1, :N_CLASSES].set(w2.T)
    b2_row = jnp.zeros((1, 128), jnp.float32).at[0, :N_CLASSES].set(b2)
    prep["mlp"] = (w1_pad, b1_row, w2_pad, b2_row)           # f32 for the head
    return prep


# ---------------------------------------------------------------------------
# Forward pass (3 pallas_calls total)
# ---------------------------------------------------------------------------
def cnnnet_forward(prep, x_nchw):
    # NCHW -> NHWC (Cin=1, layout-free), bf16 activations
    x = jnp.transpose(x_nchw, (0, 2, 3, 1)).astype(jnp.bfloat16)   # (B, 28, 28, 1)
    w1m, s1 = prep["conv1"]
    x = conv_layer(x, w1m, s1, k=3, stride=2, pad=1, k_pad=16)     # (B, 14, 14, 16)
    w2m, s2 = prep["conv2"]
    x = conv_layer(x, w2m, s2, k=3, stride=2, pad=1)               # (B, 7, 7, 32)
    # fused tail: conv3 + conv4 + BN + ReLU + flatten + mlp1 + mlp2 in ONE call
    p3 = conv3_patches_posmajor(x)                                 # (16, B, 288)
    w3m, s3 = prep["conv3"]
    w4m, s4 = prep["conv4"]
    w1p, b1r, w2p, b2r = prep["mlp"]
    out = tail_fused(p3, w3m, s3, w4m, s4, w1p, b1r, w2p, b2r)     # (B, 128) f32
    return out[:, :N_CLASSES]


# ---------------------------------------------------------------------------
# Deterministic synthetic parameters (eval-mode BN stats)
# ---------------------------------------------------------------------------
def make_params(key):
    def nrm(k, shape, s=0.1):
        return s * jax.random.normal(k, shape, dtype=jnp.float32)

    conv_defs = [("conv1", 1, 16, 3), ("conv2", 16, 32, 3),
                 ("conv3", 32, 64, 3), ("conv4", 64, 64, 2)]
    keys = jax.random.split(key, 6 * len(conv_defs) + 4)
    params = {}
    i = 0
    for name, cin, cout, k in conv_defs:
        params[name] = dict(
            w=nrm(keys[i], (cout, cin, k, k)),
            b=nrm(keys[i + 1], (cout,)),
            gamma=1.0 + nrm(keys[i + 2], (cout,), 0.05),
            beta=nrm(keys[i + 3], (cout,), 0.05),
            rmean=nrm(keys[i + 4], (cout,), 0.05),
            rvar=1.0 + jnp.abs(nrm(keys[i + 5], (cout,), 0.05)),
        )
        i += 6
    params["mlp1"] = dict(w=nrm(keys[i], (100, 256)), b=nrm(keys[i + 1], (100,)))
    params["mlp2"] = dict(w=nrm(keys[i + 2], (N_CLASSES, 100)),
                          b=nrm(keys[i + 3], (N_CLASSES,)))
    return params


if __name__ == "__main__":
    key = jax.random.PRNGKey(0)
    pkey, xkey = jax.random.split(key)
    params = make_params(pkey)
    prep = prepare_params(params)      # BN folding / weight packing done once, outside jit
    # 28x28 input so the conv stack yields 2x2x64 = 256 features for mlp1.
    x = jax.random.normal(xkey, (2, 1, 28, 28), dtype=jnp.float32)

    fwd = jax.jit(cnnnet_forward)
    out = jax.block_until_ready(fwd(prep, x))
    assert out.shape == (2, N_CLASSES), out.shape
    assert bool(jnp.all(jnp.isfinite(out)))
    print("KERNEL_OK")
</pallas_src>

<mosaic_0001>
module attributes {stable_mosaic.version = 11 : i64} {
  func.func @_matmul_bias_act_kernel(%arg0: i32, %arg1: memref<200x16xbf16, #tpu.memory_space<vmem>>, %arg2: memref<16x16xbf16, #tpu.memory_space<vmem>>, %arg3: memref<1x16xf32, #tpu.memory_space<vmem>>, %arg4: memref<200x16xbf16, #tpu.memory_space<vmem>>) attributes {dimension_semantics = [#tpu.dimension_semantics<parallel>], iteration_bounds = array<i64: 2>, scalar_prefetch = 0 : i64, scratch_operands = 0 : i64, tpu.core_type = #tpu.core_type<tc>, window_params = [{transform_indices = @transform_0, window_bounds = array<i64: 200, 16>}, {pipeline_mode = #tpu.pipeline_mode<synchronous>, transform_indices = @transform_1, window_bounds = array<i64: 16, 16>}, {pipeline_mode = #tpu.pipeline_mode<synchronous>, transform_indices = @transform_2, window_bounds = array<i64: 1, 16>}, {transform_indices = @transform_3, window_bounds = array<i64: 200, 16>}]} {
    %c0 = arith.constant 0 : index
    %c0_0 = arith.constant 0 : index
    %0 = vector.load %arg1[%c0, %c0_0] : memref<200x16xbf16, #tpu.memory_space<vmem>>, vector<200x16xbf16>
    %c0_1 = arith.constant 0 : index
    %c0_2 = arith.constant 0 : index
    %1 = vector.load %arg2[%c0_1, %c0_2] : memref<16x16xbf16, #tpu.memory_space<vmem>>, vector<16x16xbf16>
    %cst = arith.constant dense<0.000000e+00> : vector<200x16xf32>
    %2 = tpu.matmul %0, %1, %cst {dimension_numbers = #tpu.dot_dimension_numbers<[1], [0], [0], [1], [0, 0, 1, 1], [], []>} : vector<200x16xbf16>, vector<16x16xbf16>, vector<200x16xf32> -> vector<200x16xf32>
    %c0_3 = arith.constant 0 : index
    %c0_4 = arith.constant 0 : index
    %3 = vector.load %arg3[%c0_3, %c0_4] : memref<1x16xf32, #tpu.memory_space<vmem>>, vector<1x16xf32>
    %4 = vector.broadcast %3 : vector<1x16xf32> to vector<200x16xf32>
    %5 = arith.addf %2, %4 : vector<200x16xf32>
    %cst_5 = arith.constant 0.000000e+00 : f32
    %6 = vector.broadcast %cst_5 : f32 to vector<200x16xf32>
    %7 = arith.maximumf %5, %6 : vector<200x16xf32>
    %8 = arith.truncf %7 : vector<200x16xf32> to vector<200x16xbf16>
    %c0_6 = arith.constant 0 : index
    %c0_7 = arith.constant 0 : index
    %9 = vector.load %arg4[%c0_6, %c0_7] : memref<200x16xbf16, #tpu.memory_space<vmem>>, vector<200x16xbf16>
    tpu.vector_store %arg4[%c0_6, %c0_7], %8 {strides = array<i32>} : memref<200x16xbf16, #tpu.memory_space<vmem>>, vector<200x16xbf16>,
    return
  }
  func.func @transform_0(%arg0: i32) -> (i32, i32) {
    %c0_i32 = arith.constant 0 : i32
    %c0_i32_0 = arith.constant 0 : i32
    return %arg0, %c0_i32 : i32, i32
  }
  func.func @transform_1(%arg0: i32) -> (i32, i32) {
    %c0_i32 = arith.constant 0 : i32
    %c0_i32_0 = arith.constant 0 : i32
    %c0_i32_1 = arith.constant 0 : i32
    return %c0_i32, %c0_i32_0 : i32, i32
  }
  func.func @transform_2(%arg0: i32) -> (i32, i32) {
    %c0_i32 = arith.constant 0 : i32
    %c0_i32_0 = arith.constant 0 : i32
    %c0_i32_1 = arith.constant 0 : i32
    return %c0_i32, %c0_i32_0 : i32, i32
  }
  func.func @transform_3(%arg0: i32) -> (i32, i32) {
    %c0_i32 = arith.constant 0 : i32
    %c0_i32_0 = arith.constant 0 : i32
    return %arg0, %c0_i32 : i32, i32
  }
}

module attributes {stable_mosaic.version = 11 : i64} {
  func.func @_matmul_bias_act_kernel(%arg0: i32, %arg1: memref<98x144xbf16, #tpu.memory_space<vmem>>, %arg2: memref<144x32xbf16, #tpu.memory_space<vmem>>, %arg3: memref<1x32xf32, #tpu.memory_space<vmem>>, %arg4: memref<98x32xbf16, #tpu.memory_space<vmem>>) attributes {dimension_semantics = [#tpu.dimension_semantics<parallel>], iteration_bounds = array<i64: 1>, scalar_prefetch = 0 : i64, scratch_operands = 0 : i64, tpu.core_type = #tpu.core_type<tc>, window_params = [{transform_indices = @transform_0, window_bounds = array<i64: 98, 144>}, {pipeline_mode = #tpu.pipeline_mode<synchronous>, transform_indices = @transform_1, window_bounds = array<i64: 144, 32>}, {pipeline_mode = #tpu.pipeline_mode<synchronous>, transform_indices = @transform_2, window_bounds = array<i64: 1, 32>}, {transform_indices = @transform_3, window_bounds = array<i64: 98, 32>}]} {
    %c0 = arith.constant 0 : index
    %c0_0 = arith.constant 0 : index
    %0 = vector.load %arg1[%c0, %c0_0] : memref<98x144xbf16, #tpu.memory_space<vmem>>, vector<98x144xbf16>
    %c0_1 = arith.constant 0 : index
    %c0_2 = arith.constant 0 : index
    %1 = vector.load %arg2[%c0_1, %c0_2] : memref<144x32xbf16, #tpu.memory_space<vmem>>, vector<144x32xbf16>
    %cst = arith.constant dense<0.000000e+00> : vector<98x32xf32>
    %2 = tpu.matmul %0, %1, %cst {dimension_numbers = #tpu.dot_dimension_numbers<[1], [0], [0], [1], [0, 0, 1, 1], [], []>} : vector<98x144xbf16>, vector<144x32xbf16>, vector<98x32xf32> -> vector<98x32xf32>
    %c0_3 = arith.constant 0 : index
    %c0_4 = arith.constant 0 : index
    %3 = vector.load %arg3[%c0_3, %c0_4] : memref<1x32xf32, #tpu.memory_space<vmem>>, vector<1x32xf32>
    %4 = vector.broadcast %3 : vector<1x32xf32> to vector<98x32xf32>
    %5 = arith.addf %2, %4 : vector<98x32xf32>
    %cst_5 = arith.constant 0.000000e+00 : f32
    %6 = vector.broadcast %cst_5 : f32 to vector<98x32xf32>
    %7 = arith.maximumf %5, %6 : vector<98x32xf32>
    %8 = arith.truncf %7 : vector<98x32xf32> to vector<98x32xbf16>
    %c0_6 = arith.constant 0 : index
    %c0_7 = arith.constant 0 : index
    %9 = vector.load %arg4[%c0_6, %c0_7] : memref<98x32xbf16, #tpu.memory_space<vmem>>, vector<98x32xbf16>
    tpu.vector_store %arg4[%c0_6, %c0_7], %8 {strides = array<i32>} : memref<98x32xbf16, #tpu.memory_space<vmem>>, vector<98x32xbf16>,
    return
  }
  func.func @transform_0(%arg0: i32) -> (i32, i32) {
    %c0_i32 = arith.constant 0 : i32
    %c0_i32_0 = arith.constant 0 : i32
    return %arg0, %c0_i32 : i32, i32
  }
  func.func @transform_1(%arg0: i32) -> (i32, i32) {
    %c0_i32 = arith.constant 0 : i32
    %c0_i32_0 = arith.constant 0 : i32
    %c0_i32_1 = arith.constant 0 : i32
    return %c0_i32, %c0_i32_0 : i32, i32
  }
  func.func @transform_2(%arg0: i32) -> (i32, i32) {
    %c0_i32 = arith.constant 0 : i32
    %c0_i32_0 = arith.constant 0 : i32
    %c0_i32_1 = arith.constant 0 : i32
    return %c0_i32, %c0_i32_0 : i32, i32
  }
  func.func @transform_3(%arg0: i32) -> (i32, i32) {
    %c0_i32 = arith.constant 0 : i32
    %c0_i32_0 = arith.constant 0 : i32
    return %arg0, %c0_i32 : i32, i32
  }
}

module attributes {stable_mosaic.version = 11 : i64} {
  func.func @_tail_kernel(%arg0: i32, %arg1: memref<16x2x288xbf16, #tpu.memory_space<vmem>>, %arg2: memref<288x64xbf16, #tpu.memory_space<vmem>>, %arg3: memref<1x64xf32, #tpu.memory_space<vmem>>, %arg4: memref<256x64xbf16, #tpu.memory_space<vmem>>, %arg5: memref<1x64xf32, #tpu.memory_space<vmem>>, %arg6: memref<256x128xf32, #tpu.memory_space<vmem>>, %arg7: memref<1x128xf32, #tpu.memory_space<vmem>>, %arg8: memref<128x128xf32, #tpu.memory_space<vmem>>, %arg9: memref<1x128xf32, #tpu.memory_space<vmem>>, %arg10: memref<2x128xf32, #tpu.memory_space<vmem>>) attributes {dimension_semantics = [#tpu.dimension_semantics<parallel>], iteration_bounds = array<i64: 1>, scalar_prefetch = 0 : i64, scratch_operands = 0 : i64, tpu.core_type = #tpu.core_type<tc>, window_params = [{transform_indices = @transform_0, window_bounds = array<i64: 16, 2, 288>}, {pipeline_mode = #tpu.pipeline_mode<synchronous>, transform_indices = @transform_1, window_bounds = array<i64: 288, 64>}, {pipeline_mode = #tpu.pipeline_mode<synchronous>, transform_indices = @transform_2, window_bounds = array<i64: 1, 64>}, {pipeline_mode = #tpu.pipeline_mode<synchronous>, transform_indices = @transform_3, window_bounds = array<i64: 256, 64>}, {pipeline_mode = #tpu.pipeline_mode<synchronous>, transform_indices = @transform_4, window_bounds = array<i64: 1, 64>}, {pipeline_mode = #tpu.pipeline_mode<synchronous>, transform_indices = @transform_5, window_bounds = array<i64: 256, 128>}, {pipeline_mode = #tpu.pipeline_mode<synchronous>, transform_indices = @transform_6, window_bounds = array<i64: 1, 128>}, {pipeline_mode = #tpu.pipeline_mode<synchronous>, transform_indices = @transform_7, window_bounds = array<i64: 128, 128>}, {pipeline_mode = #tpu.pipeline_mode<synchronous>, transform_indices = @transform_8, window_bounds = array<i64: 1, 128>}, {transform_indices = @transform_9, window_bounds = array<i64: 2, 128>}]} {
    %c0 = arith.constant 0 : index
    %c0_0 = arith.constant 0 : index
    %0 = vector.load %arg2[%c0, %c0_0] : memref<288x64xbf16, #tpu.memory_space<vmem>>, vector<288x64xbf16>
    %c0_1 = arith.constant 0 : index
    %c0_2 = arith.constant 0 : index
    %1 = vector.load %arg3[%c0_1, %c0_2] : memref<1x64xf32, #tpu.memory_space<vmem>>, vector<1x64xf32>
    %c0_3 = arith.constant 0 : index
    %c0_4 = arith.constant 0 : index
    %2 = vector.load %arg4[%c0_3, %c0_4] : memref<256x64xbf16, #tpu.memory_space<vmem>>, vector<256x64xbf16>
    %c0_5 = arith.constant 0 : index
    %c0_6 = arith.constant 0 : index
    %3 = vector.load %arg5[%c0_5, %c0_6] : memref<1x64xf32, #tpu.memory_space<vmem>>, vector<1x64xf32>
    %c0_7 = arith.constant 0 : index
    %c0_8 = arith.constant 0 : index
    %c0_9 = arith.constant 0 : index
    %4 = vector.load %arg1[%c0_7, %c0_8, %c0_9] : memref<16x2x288xbf16, #tpu.memory_space<vmem>>, vector<1x2x288xbf16>
    %5 = vector.shape_cast %4 : vector<1x2x288xbf16> to vector<2x288xbf16>
    %cst = arith.constant dense<0.000000e+00> : vector<2x64xf32>
    %6 = tpu.matmul %5, %0, %cst {dimension_numbers = #tpu.dot_dimension_numbers<[1], [0], [0], [1], [0, 0, 1, 1], [], []>} : vector<2x288xbf16>, vector<288x64xbf16>, vector<2x64xf32> -> vector<2x64xf32>
    %7 = vector.broadcast %1 : vector<1x64xf32> to vector<2x64xf32>
    %8 = arith.addf %6, %7 : vector<2x64xf32>
    %cst_10 = arith.constant 0.000000e+00 : f32
    %9 = vector.broadcast %cst_10 : f32 to vector<2x64xf32>
    %10 = arith.maximumf %8, %9 : vector<2x64xf32>
    %11 = arith.truncf %10 : vector<2x64xf32> to vector<2x64xbf16>
    %c1 = arith.constant 1 : index
    %c0_11 = arith.constant 0 : index
    %c0_12 = arith.constant 0 : index
    %12 = vector.load %arg1[%c1, %c0_11, %c0_12] : memref<16x2x288xbf16, #tpu.memory_space<vmem>>, vector<1x2x288xbf16>
    %13 = vector.shape_cast %12 : vector<1x2x288xbf16> to vector<2x288xbf16>
    %cst_13 = arith.constant dense<0.000000e+00> : vector<2x64xf32>
    %14 = tpu.matmul %13, %0, %cst_13 {dimension_numbers = #tpu.dot_dimension_numbers<[1], [0], [0], [1], [0, 0, 1, 1], [], []>} : vector<2x288xbf16>, vector<288x64xbf16>, vector<2x64xf32> -> vector<2x64xf32>
    %15 = vector.broadcast %1 : vector<1x64xf32> to vector<2x64xf32>
    %16 = arith.addf %14, %15 : vector<2x64xf32>
    %cst_14 = arith.constant 0.000000e+00 : f32
    %17 = vector.broadcast %cst_14 : f32 to vector<2x64xf32>
    %18 = arith.maximumf %16, %17 : vector<2x64xf32>
    %19 = arith.truncf %18 : vector<2x64xf32> to vector<2x64xbf16>
    %c4 = arith.constant 4 : index
    %c0_15 = arith.constant 0 : index
    %c0_16 = arith.constant 0 : index
    %20 = vector.load %arg1[%c4, %c0_15, %c0_16] : memref<16x2x288xbf16, #tpu.memory_space<vmem>>, vector<1x2x288xbf16>
    %21 = vector.shape_cast %20 : vector<1x2x288xbf16> to vector<2x288xbf16>
    %cst_17 = arith.constant dense<0.000000e+00> : vector<2x64xf32>
    %22 = tpu.matmul %21, %0, %cst_17 {dimension_numbers = #tpu.dot_dimension_numbers<[1], [0], [0], [1], [0, 0, 1, 1], [], []>} : vector<2x288xbf16>, vector<288x64xbf16>, vector<2x64xf32> -> vector<2x64xf32>
    %23 = vector.broadcast %1 : vector<1x64xf32> to vector<2x64xf32>
    %24 = arith.addf %22, %23 : vector<2x64xf32>
    %cst_18 = arith.constant 0.000000e+00 : f32
    %25 = vector.broadcast %cst_18 : f32 to vector<2x64xf32>
    %26 = arith.maximumf %24, %25 : vector<2x64xf32>
    %27 = arith.truncf %26 : vector<2x64xf32> to vector<2x64xbf16>
    %c5 = arith.constant 5 : index
    %c0_19 = arith.constant 0 : index
    %c0_20 = arith.constant 0 : index
    %28 = vector.load %arg1[%c5, %c0_19, %c0_20] : memref<16x2x288xbf16, #tpu.memory_space<vmem>>, vector<1x2x288xbf16>
    %29 = vector.shape_cast %28 : vector<1x2x288xbf16> to vector<2x288xbf16>
    %cst_21 = arith.constant dense<0.000000e+00> : vector<2x64xf32>
    %30 = tpu.matmul %29, %0, %cst_21 {dimension_numbers = #tpu.dot_dimension_numbers<[1], [0], [0], [1], [0, 0, 1, 1], [], []>} : vector<2x288xbf16>, vector<288x64xbf16>, vector<2x64xf32> -> vector<2x64xf32>
    %31 = vector.broadcast %1 : vector<1x64xf32> to vector<2x64xf32>
    %32 = arith.addf %30, %31 : vector<2x64xf32>
    %cst_22 = arith.constant 0.000000e+00 : f32
    %33 = vector.broadcast %cst_22 : f32 to vector<2x64xf32>
    %34 = arith.maximumf %32, %33 : vector<2x64xf32>
    %35 = arith.truncf %34 : vector<2x64xf32> to vector<2x64xbf16>
    %36 = tpu.concatenate %11, %19, %27, %35 in 1 : vector<2x64xbf16>, vector<2x64xbf16>, vector<2x64xbf16>, vector<2x64xbf16> -> vector<2x256xbf16>
    %cst_23 = arith.constant dense<0.000000e+00> : vector<2x64xf32>
    %37 = tpu.matmul %36, %2, %cst_23 {dimension_numbers = #tpu.dot_dimension_numbers<[1], [0], [0], [1], [0, 0, 1, 1], [], []>} : vector<2x256xbf16>, vector<256x64xbf16>, vector<2x64xf32> -> vector<2x64xf32>
    %38 = vector.broadcast %3 : vector<1x64xf32> to vector<2x64xf32>
    %39 = arith.addf %37, %38 : vector<2x64xf32>
    %cst_24 = arith.constant 0.000000e+00 : f32
    %40 = vector.broadcast %cst_24 : f32 to vector<2x64xf32>
    %41 = arith.maximumf %39, %40 : vector<2x64xf32>
    %c2 = arith.constant 2 : index
    %c0_25 = arith.constant 0 : index
    %c0_26 = arith.constant 0 : index
    %42 = vector.load %arg1[%c2, %c0_25, %c0_26] : memref<16x2x288xbf16, #tpu.memory_space<vmem>>, vector<1x2x288xbf16>
    %43 = vector.shape_cast %42 : vector<1x2x288xbf16> to vector<2x288xbf16>
    %cst_27 = arith.constant dense<0.000000e+00> : vector<2x64xf32>
    %44 = tpu.matmul %43, %0, %cst_27 {dimension_numbers = #tpu.dot_dimension_numbers<[1], [0], [0], [1], [0, 0, 1, 1], [], []>} : vector<2x288xbf16>, vector<288x64xbf16>, vector<2x64xf32> -> vector<2x64xf32>
    %45 = vector.broadcast %1 : vector<1x64xf32> to vector<2x64xf32>
    %46 = arith.addf %44, %45 : vector<2x64xf32>
    %cst_28 = arith.constant 0.000000e+00 : f32
    %47 = vector.broadcast %cst_28 : f32 to vector<2x64xf32>
    %48 = arith.maximumf %46, %47 : vector<2x64xf32>
    %49 = arith.truncf %48 : vector<2x64xf32> to vector<2x64xbf16>
    %c3 = arith.constant 3 : index
    %c0_29 = arith.constant 0 : index
    %c0_30 = arith.constant 0 : index
    %50 = vector.load %arg1[%c3, %c0_29, %c0_30] : memref<16x2x288xbf16, #tpu.memory_space<vmem>>, vector<1x2x288xbf16>
    %51 = vector.shape_cast %50 : vector<1x2x288xbf16> to vector<2x288xbf16>
    %cst_31 = arith.constant dense<0.000000e+00> : vector<2x64xf32>
    %52 = tpu.matmul %51, %0, %cst_31 {dimension_numbers = #tpu.dot_dimension_numbers<[1], [0], [0], [1], [0, 0, 1, 1], [], []>} : vector<2x288xbf16>, vector<288x64xbf16>, vector<2x64xf32> -> vector<2x64xf32>
    %53 = vector.broadcast %1 : vector<1x64xf32> to vector<2x64xf32>
    %54 = arith.addf %52, %53 : vector<2x64xf32>
    %cst_32 = arith.constant 0.000000e+00 : f32
    %55 = vector.broadcast %cst_32 : f32 to vector<2x64xf32>
    %56 = arith.maximumf %54, %55 : vector<2x64xf32>
    %57 = arith.truncf %56 : vector<2x64xf32> to vector<2x64xbf16>
    %c6 = arith.constant 6 : index
    %c0_33 = arith.constant 0 : index
    %c0_34 = arith.constant 0 : index
    %58 = vector.load %arg1[%c6, %c0_33, %c0_34] : memref<16x2x288xbf16, #tpu.memory_space<vmem>>, vector<1x2x288xbf16>
    %59 = vector.shape_cast %58 : vector<1x2x288xbf16> to vector<2x288xbf16>
    %cst_35 = arith.constant dense<0.000000e+00> : vector<2x64xf32>
    %60 = tpu.matmul %59, %0, %cst_35 {dimension_numbers = #tpu.dot_dimension_numbers<[1], [0], [0], [1], [0, 0, 1, 1], [], []>} : vector<2x288xbf16>, vector<288x64xbf16>, vector<2x64xf32> -> vector<2x64xf32>
    %61 = vector.broadcast %1 : vector<1x64xf32> to vector<2x64xf32>
    %62 = arith.addf %60, %61 : vector<2x64xf32>
    %cst_36 = arith.constant 0.000000e+00 : f32
    %63 = vector.broadcast %cst_36 : f32 to vector<2x64xf32>
    %64 = arith.maximumf %62, %63 : vector<2x64xf32>
    %65 = arith.truncf %64 : vector<2x64xf32> to vector<2x64xbf16>
    %c7 = arith.constant 7 : index
    %c0_37 = arith.constant 0 : index
    %c0_38 = arith.constant 0 : index
    %66 = vector.load %arg1[%c7, %c0_37, %c0_38] : memref<16x2x288xbf16, #tpu.memory_space<vmem>>, vector<1x2x288xbf16>
    %67 = vector.shape_cast %66 : vector<1x2x288xbf16> to vector<2x288xbf16>
    %cst_39 = arith.constant dense<0.000000e+00> : vector<2x64xf32>
    %68 = tpu.matmul %67, %0, %cst_39 {dimension_numbers = #tpu.dot_dimension_numbers<[1], [0], [0], [1], [0, 0, 1, 1], [], []>} : vector<2x288xbf16>, vector<288x64xbf16>, vector<2x64xf32> -> vector<2x64xf32>
    %69 = vector.broadcast %1 : vector<1x64xf32> to vector<2x64xf32>
    %70 = arith.addf %68, %69 : vector<2x64xf32>
    %cst_40 = arith.constant 0.000000e+00 : f32
    %71 = vector.broadcast %cst_40 : f32 to vector<2x64xf32>
    %72 = arith.maximumf %70, %71 : vector<2x64xf32>
    %73 = arith.truncf %72 : vector<2x64xf32> to vector<2x64xbf16>
    %74 = tpu.concatenate %49, %57, %65, %73 in 1 : vector<2x64xbf16>, vector<2x64xbf16>, vector<2x64xbf16>, vector<2x64xbf16> -> vector<2x256xbf16>
    %cst_41 = arith.constant dense<0.000000e+00> : vector<2x64xf32>
    %75 = tpu.matmul %74, %2, %cst_41 {dimension_numbers = #tpu.dot_dimension_numbers<[1], [0], [0], [1], [0, 0, 1, 1], [], []>} : vector<2x256xbf16>, vector<256x64xbf16>, vector<2x64xf32> -> vector<2x64xf32>
    %76 = vector.broadcast %3 : vector<1x64xf32> to vector<2x64xf32>
    %77 = arith.addf %75, %76 : vector<2x64xf32>
    %cst_42 = arith.constant 0.000000e+00 : f32
    %78 = vector.broadcast %cst_42 : f32 to vector<2x64xf32>
    %79 = arith.maximumf %77, %78 : vector<2x64xf32>
    %c8 = arith.constant 8 : index
    %c0_43 = arith.constant 0 : index
    %c0_44 = arith.constant 0 : index
    %80 = vector.load %arg1[%c8, %c0_43, %c0_44] : memref<16x2x288xbf16, #tpu.memory_space<vmem>>, vector<1x2x288xbf16>
    %81 = vector.shape_cast %80 : vector<1x2x288xbf16> to vector<2x288xbf16>
    %cst_45 = arith.constant dense<0.000000e+00> : vector<2x64xf32>
    %82 = tpu.matmul %81, %0, %cst_45 {dimension_numbers = #tpu.dot_dimension_numbers<[1], [0], [0], [1], [0, 0, 1, 1], [], []>} : vector<2x288xbf16>, vector<288x64xbf16>, vector<2x64xf32> -> vector<2x64xf32>
    %83 = vector.broadcast %1 : vector<1x64xf32> to vector<2x64xf32>
    %84 = arith.addf %82, %83 : vector<2x64xf32>
    %cst_46 = arith.constant 0.000000e+00 : f32
    %85 = vector.broadcast %cst_46 : f32 to vector<2x64xf32>
    %86 = arith.maximumf %84, %85 : vector<2x64xf32>
    %87 = arith.truncf %86 : vector<2x64xf32> to vector<2x64xbf16>
    %c9 = arith.constant 9 : index
    %c0_47 = arith.constant 0 : index
    %c0_48 = arith.constant 0 : index
    %88 = vector.load %arg1[%c9, %c0_47, %c0_48] : memref<16x2x288xbf16, #tpu.memory_space<vmem>>, vector<1x2x288xbf16>
    %89 = vector.shape_cast %88 : vector<1x2x288xbf16> to vector<2x288xbf16>
    %cst_49 = arith.constant dense<0.000000e+00> : vector<2x64xf32>
    %90 = tpu.matmul %89, %0, %cst_49 {dimension_numbers = #tpu.dot_dimension_numbers<[1], [0], [0], [1], [0, 0, 1, 1], [], []>} : vector<2x288xbf16>, vector<288x64xbf16>, vector<2x64xf32> -> vector<2x64xf32>
    %91 = vector.broadcast %1 : vector<1x64xf32> to vector<2x64xf32>
    %92 = arith.addf %90, %91 : vector<2x64xf32>
    %cst_50 = arith.constant 0.000000e+00 : f32
    %93 = vector.broadcast %cst_50 : f32 to vector<2x64xf32>
    %94 = arith.maximumf %92, %93 : vector<2x64xf32>
    %95 = arith.truncf %94 : vector<2x64xf32> to vector<2x64xbf16>
    %c12 = arith.constant 12 : index
    %c0_51 = arith.constant 0 : index
    %c0_52 = arith.constant 0 : index
    %96 = vector.load %arg1[%c12, %c0_51, %c0_52] : memref<16x2x288xbf16, #tpu.memory_space<vmem>>, vector<1x2x288xbf16>
    %97 = vector.shape_cast %96 : vector<1x2x288xbf16> to vector<2x288xbf16>
    %cst_53 = arith.constant dense<0.000000e+00> : vector<2x64xf32>
    %98 = tpu.matmul %97, %0, %cst_53 {dimension_numbers = #tpu.dot_dimension_numbers<[1], [0], [0], [1], [0, 0, 1, 1], [], []>} : vector<2x288xbf16>, vector<288x64xbf16>, vector<2x64xf32> -> vector<2x64xf32>
    %99 = vector.broadcast %1 : vector<1x64xf32> to vector<2x64xf32>
    %100 = arith.addf %98, %99 : vector<2x64xf32>
    %cst_54 = arith.constant 0.000000e+00 : f32
    %101 = vector.broadcast %cst_54 : f32 to vector<2x64xf32>
    %102 = arith.maximumf %100, %101 : vector<2x64xf32>
    %103 = arith.truncf %102 : vector<2x64xf32> to vector<2x64xbf16>
    %c13 = arith.constant 13 : index
    %c0_55 = arith.constant 0 : index
    %c0_56 = arith.constant 0 : index
    %104 = vector.load %arg1[%c13, %c0_55, %c0_56] : memref<16x2x288xbf16, #tpu.memory_space<vmem>>, vector<1x2x288xbf16>
    %105 = vector.shape_cast %104 : vector<1x2x288xbf16> to vector<2x288xbf16>
    %cst_57 = arith.constant dense<0.000000e+00> : vector<2x64xf32>
    %106 = tpu.matmul %105, %0, %cst_57 {dimension_numbers = #tpu.dot_dimension_numbers<[1], [0], [0], [1], [0, 0, 1, 1], [], []>} : vector<2x288xbf16>, vector<288x64xbf16>, vector<2x64xf32> -> vector<2x64xf32>
    %107 = vector.broadcast %1 : vector<1x64xf32> to vector<2x64xf32>
    %108 = arith.addf %106, %107 : vector<2x64xf32>
    %cst_58 = arith.constant 0.000000e+00 : f32
    %109 = vector.broadcast %cst_58 : f32 to vector<2x64xf32>
    %110 = arith.maximumf %108, %109 : vector<2x64xf32>
    %111 = arith.truncf %110 : vector<2x64xf32> to vector<2x64xbf16>
    %112 = tpu.concatenate %87, %95, %103, %111 in 1 : vector<2x64xbf16>, vector<2x64xbf16>, vector<2x64xbf16>, vector<2x64xbf16> -> vector<2x256xbf16>
    %cst_59 = arith.constant dense<0.000000e+00> : vector<2x64xf32>
    %113 = tpu.matmul %112, %2, %cst_59 {dimension_numbers = #tpu.dot_dimension_numbers<[1], [0], [0], [1], [0, 0, 1, 1], [], []>} : vector<2x256xbf16>, vector<256x64xbf16>, vector<2x64xf32> -> vector<2x64xf32>
    %114 = vector.broadcast %3 : vector<1x64xf32> to vector<2x64xf32>
    %115 = arith.addf %113, %114 : vector<2x64xf32>
    %cst_60 = arith.constant 0.000000e+00 : f32
    %116 = vector.broadcast %cst_60 : f32 to vector<2x64xf32>
    %117 = arith.maximumf %115, %116 : vector<2x64xf32>
    %c10 = arith.constant 10 : index
    %c0_61 = arith.constant 0 : index
    %c0_62 = arith.constant 0 : index
    %118 = vector.load %arg1[%c10, %c0_61, %c0_62] : memref<16x2x288xbf16, #tpu.memory_space<vmem>>, vector<1x2x288xbf16>
    %119 = vector.shape_cast %118 : vector<1x2x288xbf16> to vector<2x288xbf16>
    %cst_63 = arith.constant dense<0.000000e+00> : vector<2x64xf32>
    %120 = tpu.matmul %119, %0, %cst_63 {dimension_numbers = #tpu.dot_dimension_numbers<[1], [0], [0], [1], [0, 0, 1, 1], [], []>} : vector<2x288xbf16>, vector<288x64xbf16>, vector<2x64xf32> -> vector<2x64xf32>
    %121 = vector.broadcast %1 : vector<1x64xf32> to vector<2x64xf32>
    %122 = arith.addf %120, %121 : vector<2x64xf32>
    %cst_64 = arith.constant 0.000000e+00 : f32
    %123 = vector.broadcast %cst_64 : f32 to vector<2x64xf32>
    %124 = arith.maximumf %122, %123 : vector<2x64xf32>
    %125 = arith.truncf %124 : vector<2x64xf32> to vector<2x64xbf16>
    %c11 = arith.constant 11 : index
    %c0_65 = arith.constant 0 : index
    %c0_66 = arith.constant 0 : index
    %126 = vector.load %arg1[%c11, %c0_65, %c0_66] : memref<16x2x288xbf16, #tpu.memory_space<vmem>>, vector<1x2x288xbf16>
    %127 = vector.shape_cast %126 : vector<1x2x288xbf16> to vector<2x288xbf16>
    %cst_67 = arith.constant dense<0.000000e+00> : vector<2x64xf32>
    %128 = tpu.matmul %127, %0, %cst_67 {dimension_numbers = #tpu.dot_dimension_numbers<[1], [0], [0], [1], [0, 0, 1, 1], [], []>} : vector<2x288xbf16>, vector<288x64xbf16>, vector<2x64xf32> -> vector<2x64xf32>
    %129 = vector.broadcast %1 : vector<1x64xf32> to vector<2x64xf32>
    %130 = arith.addf %128, %129 : vector<2x64xf32>
    %cst_68 = arith.constant 0.000000e+00 : f32
    %131 = vector.broadcast %cst_68 : f32 to vector<2x64xf32>
    %132 = arith.maximumf %130, %131 : vector<2x64xf32>
    %133 = arith.truncf %132 : vector<2x64xf32> to vector<2x64xbf16>
    %c14 = arith.constant 14 : index
    %c0_69 = arith.constant 0 : index
    %c0_70 = arith.constant 0 : index
    %134 = vector.load %arg1[%c14, %c0_69, %c0_70] : memref<16x2x288xbf16, #tpu.memory_space<vmem>>, vector<1x2x288xbf16>
    %135 = vector.shape_cast %134 : vector<1x2x288xbf16> to vector<2x288xbf16>
    %cst_71 = arith.constant dense<0.000000e+00> : vector<2x64xf32>
    %136 = tpu.matmul %135, %0, %cst_71 {dimension_numbers = #tpu.dot_dimension_numbers<[1], [0], [0], [1], [0, 0, 1, 1], [], []>} : vector<2x288xbf16>, vector<288x64xbf16>, vector<2x64xf32> -> vector<2x64xf32>
    %137 = vector.broadcast %1 : vector<1x64xf32> to vector<2x64xf32>
    %138 = arith.addf %136, %137 : vector<2x64xf32>
    %cst_72 = arith.constant 0.000000e+00 : f32
    %139 = vector.broadcast %cst_72 : f32 to vector<2x64xf32>
    %140 = arith.maximumf %138, %139 : vector<2x64xf32>
    %141 = arith.truncf %140 : vector<2x64xf32> to vector<2x64xbf16>
    %c15 = arith.constant 15 : index
    %c0_73 = arith.constant 0 : index
    %c0_74 = arith.constant 0 : index
    %142 = vector.load %arg1[%c15, %c0_73, %c0_74] : memref<16x2x288xbf16, #tpu.memory_space<vmem>>, vector<1x2x288xbf16>
    %143 = vector.shape_cast %142 : vector<1x2x288xbf16> to vector<2x288xbf16>
    %cst_75 = arith.constant dense<0.000000e+00> : vector<2x64xf32>
    %144 = tpu.matmul %143, %0, %cst_75 {dimension_numbers = #tpu.dot_dimension_numbers<[1], [0], [0], [1], [0, 0, 1, 1], [], []>} : vector<2x288xbf16>, vector<288x64xbf16>, vector<2x64xf32> -> vector<2x64xf32>
    %145 = vector.broadcast %1 : vector<1x64xf32> to vector<2x64xf32>
    %146 = arith.addf %144, %145 : vector<2x64xf32>
    %cst_76 = arith.constant 0.000000e+00 : f32
    %147 = vector.broadcast %cst_76 : f32 to vector<2x64xf32>
    %148 = arith.maximumf %146, %147 : vector<2x64xf32>
    %149 = arith.truncf %148 : vector<2x64xf32> to vector<2x64xbf16>
    %150 = tpu.concatenate %125, %133, %141, %149 in 1 : vector<2x64xbf16>, vector<2x64xbf16>, vector<2x64xbf16>, vector<2x64xbf16> -> vector<2x256xbf16>
    %cst_77 = arith.constant dense<0.000000e+00> : vector<2x64xf32>
    %151 = tpu.matmul %150, %2, %cst_77 {dimension_numbers = #tpu.dot_dimension_numbers<[1], [0], [0], [1], [0, 0, 1, 1], [], []>} : vector<2x256xbf16>, vector<256x64xbf16>, vector<2x64xf32> -> vector<2x64xf32>
    %152 = vector.broadcast %3 : vector<1x64xf32> to vector<2x64xf32>
    %153 = arith.addf %151, %152 : vector<2x64xf32>
    %cst_78 = arith.constant 0.000000e+00 : f32
    %154 = vector.broadcast %cst_78 : f32 to vector<2x64xf32>
    %155 = arith.maximumf %153, %154 : vector<2x64xf32>
    %156 = tpu.concatenate %41, %79, %117, %155 in 1 : vector<2x64xf32>, vector<2x64xf32>, vector<2x64xf32>, vector<2x64xf32> -> vector<2x256xf32>
    %c0_79 = arith.constant 0 : index
    %c0_80 = arith.constant 0 : index
    %157 = vector.load %arg6[%c0_79, %c0_80] : memref<256x128xf32, #tpu.memory_space<vmem>>, vector<256x128xf32>
    %cst_81 = arith.constant dense<0.000000e+00> : vector<2x128xf32>
    %158 = tpu.matmul %156, %157, %cst_81 {dimension_numbers = #tpu.dot_dimension_numbers<[1], [0], [0], [1], [0, 0, 1, 1], [], []>} : vector<2x256xf32>, vector<256x128xf32>, vector<2x128xf32> -> vector<2x128xf32>
    %c0_82 = arith.constant 0 : index
    %c0_83 = arith.constant 0 : index
    %159 = vector.load %arg7[%c0_82, %c0_83] : memref<1x128xf32, #tpu.memory_space<vmem>>, vector<1x128xf32>
    %160 = vector.broadcast %159 : vector<1x128xf32> to vector<2x128xf32>
    %161 = arith.addf %158, %160 : vector<2x128xf32>
    %c0_84 = arith.constant 0 : index
    %c0_85 = arith.constant 0 : index
    %162 = vector.load %arg8[%c0_84, %c0_85] : memref<128x128xf32, #tpu.memory_space<vmem>>, vector<128x128xf32>
    %cst_86 = arith.constant dense<0.000000e+00> : vector<2x128xf32>
    %163 = tpu.matmul %161, %162, %cst_86 {dimension_numbers = #tpu.dot_dimension_numbers<[1], [0], [0], [1], [0, 0, 1, 1], [], []>} : vector<2x128xf32>, vector<128x128xf32>, vector<2x128xf32> -> vector<2x128xf32>
    %c0_87 = arith.constant 0 : index
    %c0_88 = arith.constant 0 : index
    %164 = vector.load %arg9[%c0_87, %c0_88] : memref<1x128xf32, #tpu.memory_space<vmem>>, vector<1x128xf32>
    %165 = vector.broadcast %164 : vector<1x128xf32> to vector<2x128xf32>
    %166 = arith.addf %163, %165 : vector<2x128xf32>
    %c0_89 = arith.constant 0 : index
    %c0_90 = arith.constant 0 : index
    %167 = vector.load %arg10[%c0_89, %c0_90] : memref<2x128xf32, #tpu.memory_space<vmem>>, vector<2x128xf32>
    tpu.vector_store %arg10[%c0_89, %c0_90], %166 {strides = array<i32>} : memref<2x128xf32, #tpu.memory_space<vmem>>, vector<2x128xf32>,
    return
  }
  func.func @transform_0(%arg0: i32) -> (i32, i32, i32) {
    %c0_i32 = arith.constant 0 : i32
    %c0_i32_0 = arith.constant 0 : i32
    %c0_i32_1 = arith.constant 0 : i32
    return %c0_i32, %arg0, %c0_i32_0 : i32, i32, i32
  }
  func.func @transform_1(%arg0: i32) -> (i32, i32) {
    %c0_i32 = arith.constant 0 : i32
    %c0_i32_0 = arith.constant 0 : i32
    %c0_i32_1 = arith.constant 0 : i32
    return %c0_i32, %c0_i32_0 : i32, i32
  }
  func.func @transform_2(%arg0: i32) -> (i32, i32) {
    %c0_i32 = arith.constant 0 : i32
    %c0_i32_0 = arith.constant 0 : i32
    %c0_i32_1 = arith.constant 0 : i32
    return %c0_i32, %c0_i32_0 : i32, i32
  }
  func.func @transform_3(%arg0: i32) -> (i32, i32) {
    %c0_i32 = arith.constant 0 : i32
    %c0_i32_0 = arith.constant 0 : i32
    %c0_i32_1 = arith.constant 0 : i32
    return %c0_i32, %c0_i32_0 : i32, i32
  }
  func.func @transform_4(%arg0: i32) -> (i32, i32) {
    %c0_i32 = arith.constant 0 : i32
    %c0_i32_0 = arith.constant 0 : i32
    %c0_i32_1 = arith.constant 0 : i32
    return %c0_i32, %c0_i32_0 : i32, i32
  }
  func.func @transform_5(%arg0: i32) -> (i32, i32) {
    %c0_i32 = arith.constant 0 : i32
    %c0_i32_0 = arith.constant 0 : i32
    %c0_i32_1 = arith.constant 0 : i32
    return %c0_i32, %c0_i32_0 : i32, i32
  }
  func.func @transform_6(%arg0: i32) -> (i32, i32) {
    %c0_i32 = arith.constant 0 : i32
    %c0_i32_0 = arith.constant 0 : i32
    %c0_i32_1 = arith.constant 0 : i32
    return %c0_i32, %c0_i32_0 : i32, i32
  }
  func.func @transform_7(%arg0: i32) -> (i32, i32) {
    %c0_i32 = arith.constant 0 : i32
    %c0_i32_0 = arith.constant 0 : i32
    %c0_i32_1 = arith.constant 0 : i32
    return %c0_i32, %c0_i32_0 : i32, i32
  }
  func.func @transform_8(%arg0: i32) -> (i32, i32) {
    %c0_i32 = arith.constant 0 : i32
    %c0_i32_0 = arith.constant 0 : i32
    %c0_i32_1 = arith.constant 0 : i32
    return %c0_i32, %c0_i32_0 : i32, i32
  }
  func.func @transform_9(%arg0: i32) -> (i32, i32) {
    %c0_i32 = arith.constant 0 : i32
    %c0_i32_0 = arith.constant 0 : i32
    return %arg0, %c0_i32 : i32, i32
  }
}

</mosaic_0001>

<llo_original>
// kernel: cnnnet_forward.3
$region0: #{cnnnet_forward.3}
  #allocation0 [shape = 'u32[]', space=smem, size = 0x4, offset = 0x4, fixed_abs, tag = 'smem constant byte address 0x4 - core index']
  #allocation1 [shape = 'u32[72,128]{1,0:T(1,128)}', space=vmem, size = 0x9000, scoped, tag = 'internal scratch']
  %s0 = inlined_call_operand.vmem [shape: bf16[392,16], index: 0, kind: input, shape index: {}]
  %s1 = inlined_call_operand.vmem [shape: bf16[16,16], index: 1, kind: input, shape index: {}]
  %s2 = inlined_call_operand.vmem [shape: f32[1,16], index: 2, kind: input, shape index: {}]
  %s3 = inlined_call_operand.vmem [shape: bf16[392,16], index: 3, kind: output, shape index: {}]
  %s4 = sld [smem:[#allocation0]]
  $region89: #{cnnnet_forward.3} parent=0
    _
  %s6 = ssub.s32 1, %s4
  %s7 = scalar_select 0, %s6, %s4
  $region1: #{cnnnet_forward.3} parent=0
    #allocation2 [shape = 'u8[102400]{0}', space=vmem, size = 0x19000, scoped, tag = 'output window, operand 0']
    loop: start=0, step=1, limit=4
    $region2: #{cnnnet_forward.3} parent=1 // loop_pre_header
      _
    $region3: #{cnnnet_forward.3} parent=1 // loop_header
      %s9 = sphi 0, %s13
      %p10 = scmp.ge.s32.totalorder %s9, 4
      %s19 = sphi 0, %s21
      %s22 = sphi 0, %s19
      %s23 = sphi 0, %s22
      %s39 = sphi 0, %s23
      %s43 = sphi 0, %s43
      %s45 = sphi 0, %s43
      %s46 = sphi 0, %s45
      %s60 = sphi 0, %s46
      %s64 = sphi 0, %s64
      %s66 = sphi 0, %s64
      %s67 = sphi 0, %s66
      %s81 = sphi 0, %s67
      %s87 = sphi 0, %s89
      %s90 = sphi 0, %s87
      %s91 = sphi 0, %s90
      %s107 = sphi 0, %s91
    $region4: #{cnnnet_forward.3} parent=1 // loop_header_branch
      %12 = sbr.rel (%p10) target = $region8
    $region5: #{cnnnet_forward.3} parent=1 // loop_body
      %s14 = ssub.s32 %s9, 1
      %s15 = ssub.s32 %s9, 2
      %s16 = sadd.s32 %s9, 1
      %s17 = ssub.s32 %s9, %s16
      %p18 = scmp.eq.s32.totalorder %s17, 0
      %s20 = sadd.s32 %s19, 1
      %s21 = scalar_select %p18, %s19, %s20
      %p24 = pneg %p18
      %p25 = scmp.eq.s32.totalorder %s9, 1
      %p26 = por %p24, %p25
      %p27 = scmp.ne.s32.totalorder %s19, %s22
      %p28 = scmp.eq.s32.totalorder %s9, 0
      %p29 = por %p27, %p28
      %p30 = scmp.ne.s32.totalorder %s19, %s22
      %p31 = scmp.eq.s32.totalorder %s14, 1
      %p32 = por %p30, %p31
      %p33 = scmp.ne.s32.totalorder %s22, %s23
      %p34 = scmp.eq.s32.totalorder %s14, 0
      %p35 = por %p33, %p34
      %p36 = scmp.ne.s32.totalorder %s22, %s23
      %p37 = scmp.eq.s32.totalorder %s15, 1
      %p38 = por %p36, %p37
      %p40 = scmp.ne.s32.totalorder %s23, %s39
      %p41 = scmp.eq.s32.totalorder %s15, 0
      %p42 = por %p40, %p41
      %s44 = sadd.s32 %s43, 1
      %p47 = scmp.eq.s32.totalorder %s9, 1
      %p48 = scmp.ne.s32.totalorder %s43, %s45
      %p49 = scmp.eq.s32.totalorder %s9, 0
      %p50 = por %p48, %p49
      %p51 = scmp.ne.s32.totalorder %s43, %s45
      %p52 = scmp.eq.s32.totalorder %s14, 1
      %p53 = por %p51, %p52
      %p54 = scmp.ne.s32.totalorder %s45, %s46
      %p55 = scmp.eq.s32.totalorder %s14, 0
      %p56 = por %p54, %p55
      %p57 = scmp.ne.s32.totalorder %s45, %s46
      %p58 = scmp.eq.s32.totalorder %s15, 1
      %p59 = por %p57, %p58
      %p61 = scmp.ne.s32.totalorder %s46, %s60
      %p62 = scmp.eq.s32.totalorder %s15, 0
      %p63 = por %p61, %p62
      %s65 = sadd.s32 %s64, 1
      %p68 = scmp.eq.s32.totalorder %s9, 1
      %p69 = scmp.ne.s32.totalorder %s64, %s66
      %p70 = scmp.eq.s32.totalorder %s9, 0
      %p71 = por %p69, %p70
      %p72 = scmp.ne.s32.totalorder %s64, %s66
      %p73 = scmp.eq.s32.totalorder %s14, 1
      %p74 = por %p72, %p73
      %p75 = scmp.ne.s32.totalorder %s66, %s67
      %p76 = scmp.eq.s32.totalorder %s14, 0
      %p77 = por %p75, %p76
      %p78 = scmp.ne.s32.totalorder %s66, %s67
      %p79 = scmp.eq.s32.totalorder %s15, 1
      %p80 = por %p78, %p79
      %p82 = scmp.ne.s32.totalorder %s67, %s81
      %p83 = scmp.eq.s32.totalorder %s15, 0
      %p84 = por %p82, %p83
      %s85 = ssub.s32 %s9, %s16
      %p86 = scmp.eq.s32.totalorder %s85, 0
      %s88 = sadd.s32 %s87, 1
      %s89 = scalar_select %p86, %s87, %s88
      %p92 = pneg %p86
      %p93 = scmp.eq.s32.totalorder %s9, 1
      %p94 = por %p92, %p93
      %p95 = scmp.ne.s32.totalorder %s87, %s90
      %p96 = scmp.eq.s32.totalorder %s9, 0
      %p97 = por %p95, %p96
      %p98 = scmp.ne.s32.totalorder %s87, %s90
      %p99 = scmp.eq.s32.totalorder %s14, 1
      %p100 = por %p98, %p99
      %p101 = scmp.ne.s32.totalorder %s90, %s91
      %p102 = scmp.eq.s32.totalorder %s14, 0
      %p103 = por %p101, %p102
      %p104 = scmp.ne.s32.totalorder %s90, %s91
      %p105 = scmp.eq.s32.totalorder %s15, 1
      %p106 = por %p104, %p105
      %p108 = scmp.ne.s32.totalorder %s91, %s107
      %p109 = scmp.eq.s32.totalorder %s15, 0
      %p110 = por %p108, %p109
      %p111 = scmp.le.s32.totalorder 1, %s9
      %p112 = scmp.lt.s32.totalorder %s9, 3
      %p113 = pnand %p111, %p112
      %p114 = pneg %p113
      // Predicated region
      $region9: #{cnnnet_forward.3} parent=5 // pred_check
        _
      $region10: #{cnnnet_forward.3} parent=5 // pred_check_branch
        %116 = sbr.rel (%p113) target = $region12
      $region11: #{cnnnet_forward.3} parent=5 // pred_region
        %s117 = ssub.s32 %s9, 1
        // Predicated region
        $region13: #{cnnnet_forward.3} parent=11 // pred_check
          %p118 = pneg %p56
        $region14: #{cnnnet_forward.3} parent=11 // pred_check_branch
          %120 = sbr.rel (%p118) target = $region16
        $region15: #{cnnnet_forward.3} parent=11 // pred_region
          _
        $region16: #{cnnnet_forward.3} parent=11 // pred_fallthru
          _
        // Predicated region
        $region17: #{cnnnet_forward.3} parent=11 // pred_check
          %p121 = pneg %p77
        $region18: #{cnnnet_forward.3} parent=11 // pred_check_branch
          %123 = sbr.rel (%p121) target = $region20
        $region19: #{cnnnet_forward.3} parent=11 // pred_region
          _
        $region20: #{cnnnet_forward.3} parent=11 // pred_fallthru
          _
      $region12: #{cnnnet_forward.3} parent=5 // pred_fallthru
        _
      %p124 = scmp.lt.s32.totalorder %s9, 2
      // Predicated region
      $region21: #{cnnnet_forward.3} parent=5 // pred_check
        %p125 = pneg %p124
      $region22: #{cnnnet_forward.3} parent=5 // pred_check_branch
        %127 = sbr.rel (%p125) target = $region24
      $region23: #{cnnnet_forward.3} parent=5 // pred_region
        // Predicated region
        $region25: #{cnnnet_forward.3} parent=23 // pred_check
          %p128 = pneg %p29
        $region26: #{cnnnet_forward.3} parent=23 // pred_check_branch
          %130 = sbr.rel (%p128) target = $region28
        $region27: #{cnnnet_forward.3} parent=23 // pred_region
          %s131 = smul.u32 25, %s9
          %s132 = ssub.s32 49, %s131
          %p133 = scmp.lt.s32.totalorder %s132, 25
          %s134 = scalar_select %p133, %s132, 25
          %s135 = smul.u32 4, %s134
          %p136 = scmp.lt.s32.totalorder %s131, 48
          %s137 = scalar_select %p136, %s131, 48
          %s138 = smul.addr %s137, 4
          %s139 = scalar_lea.vmem %s0, %s138
          %s140 = smul.u32 25, %s9
          %s141 = ssub.s32 49, %s140
          %p142 = scmp.lt.s32.totalorder %s141, 25
          %s143 = scalar_select %p142, %s141, 25
          %s144 = smul.u32 4, %s143
        $region28: #{cnnnet_forward.3} parent=23 // pred_fallthru
          _
      $region24: #{cnnnet_forward.3} parent=5 // pred_fallthru
        _
      %p145 = scmp.le.s32.totalorder 1, %s9
      %p146 = scmp.lt.s32.totalorder %s9, 3
      %p147 = pnand %p145, %p146
      %p148 = pneg %p147
      // Predicated region
      $region29: #{cnnnet_forward.3} parent=5 // pred_check
        _
      $region30: #{cnnnet_forward.3} parent=5 // pred_check_branch
        %150 = sbr.rel (%p147) target = $region32
      $region31: #{cnnnet_forward.3} parent=5 // pred_region
        %s151 = ssub.s32 %s9, 1
        %s152 = smul.u32 25, %s14
        %s153 = ssub.s32 49, %s152
        %p154 = scmp.lt.s32.totalorder %s153, 25
        %s155 = scalar_select %p154, %s153, 25
        %s156 = smul.u32 4, %s155
        %p157 = scmp.lt.s32.totalorder %s152, 48
        %s158 = scalar_select %p157, %s152, 48
        %s159 = smul.addr %s158, 4
        %s160 = scalar_lea.vmem %s0, %s159
        %p161 = pneg %p35
        %p162 = pneg %p32
        %p163 = pneg %p56
        %p164 = pneg %p53
        %p165 = pneg %p77
        %p166 = pneg %p74
        %p167 = pneg %p103
        %p168 = pneg %p100
        %s169 = sand.u32 %s90, 1
        %s170 = sand.u32 %s90, 1
        %s171 = smul.addr %s170, 100
        %s172 = scalar_lea.vmem [#allocation2], %s171
        %s173 = smul.u32 25, %s14
        %s174 = ssub.s32 49, %s173
        %p175 = scmp.lt.s32.totalorder %s174, 25
        %s176 = scalar_select %p175, %s174, 25
        %s177 = smul.u32 4, %s176
        %p178 = scmp.lt.s32.totalorder %s173, 48
        %s179 = scalar_select %p178, %s173, 48
        %s180 = smul.addr %s179, 4
        %s181 = scalar_lea.vmem %s0, %s180
        %s182 = smul.u32 25, %s14
        %s183 = ssub.s32 49, %s182
        %p184 = scmp.lt.s32.totalorder %s183, 25
        %s185 = scalar_select %p184, %s183, 25
        %s186 = smul.u32 4, %s185
        %s187 = smul.u32 25, %s14
        %s188 = ssub.s32 49, %s187
        %p189 = scmp.lt.s32.totalorder %s188, 25
        %s190 = scalar_select %p189, %s188, 25
        %s191 = smul.u32 4, %s190
        %v193 = vld [vmem:[%s181] sm:$0xf]
        %v194 = vld [vmem:[%s181 + $0x4] sm:$0xf]
        %v195 = vld [vmem:[%s181 + $0x8] sm:$0xf]
        %v196 = vld [vmem:[%s181 + $0xc] sm:$0xf]
        %v197 = vld [vmem:[%s181 + $0x10] sm:$0xf]
        %v198 = vld [vmem:[%s181 + $0x14] sm:$0xf]
        %v199 = vld [vmem:[%s181 + $0x18] sm:$0xf]
        %v200 = vld [vmem:[%s181 + $0x1c] sm:$0xf]
        %v201 = vld [vmem:[%s181 + $0x20] sm:$0xf]
        %v202 = vld [vmem:[%s181 + $0x24] sm:$0xf]
        %v203 = vld [vmem:[%s181 + $0x28] sm:$0xf]
        %v204 = vld [vmem:[%s181 + $0x2c] sm:$0xf]
        %v205 = vld [vmem:[%s181 + $0x30] sm:$0xf]
        %v206 = vld [vmem:[%s181 + $0x34] sm:$0xf]
        %v207 = vld [vmem:[%s181 + $0x38] sm:$0xf]
        %v208 = vld [vmem:[%s181 + $0x3c] sm:$0xf]
        %v209 = vld [vmem:[%s181 + $0x40] sm:$0xf]
        %v210 = vld [vmem:[%s181 + $0x44] sm:$0xf]
        %v211 = vld [vmem:[%s181 + $0x48] sm:$0xf]
        %v212 = vld [vmem:[%s181 + $0x4c] sm:$0xf]
        %v213 = vld [vmem:[%s181 + $0x50] sm:$0xf]
        %v214 = vld [vmem:[%s181 + $0x54] sm:$0xf]
        %v215 = vld [vmem:[%s181 + $0x58] sm:$0xf]
        %v216 = vld [vmem:[%s181 + $0x5c] sm:$0xf]
        %v217 = vld [vmem:[%s181 + $0x60] sm:$0xf]
        %v218 = vld [vmem:[%s1] sm:$0xf]
        %v219 = vld [vmem:[%s1 + $0x4] sm:$0xf]
        %v220 = vld [vmem:[%s2] sm:$0x1]
        %v222 = vperm.slane %v220, 0
        %v249 = vunpack.c.l.b16 %v193
        %v250 = vunpack.c.l.b16 %v194
        %v251 = vunpack.c.l.b16 %v195
        %v252 = vunpack.c.l.b16 %v196
        %v253 = vunpack.c.l.b16 %v197
        %v254 = vunpack.c.l.b16 %v198
        %v255 = vunpack.c.l.b16 %v199
        %v256 = vunpack.c.l.b16 %v200
        %v257 = vunpack.c.l.b16 %v201
        %v258 = vunpack.c.l.b16 %v202
        %v259 = vunpack.c.l.b16 %v203
        %v260 = vunpack.c.l.b16 %v204
        %v261 = vunpack.c.l.b16 %v205
        %v262 = vunpack.c.l.b16 %v206
        %v263 = vunpack.c.l.b16 %v207
        %v264 = vunpack.c.l.b16 %v208
        %v265 = vunpack.c.l.b16 %v209
        %v266 = vunpack.c.l.b16 %v210
        %v267 = vunpack.c.l.b16 %v211
        %v268 = vunpack.c.l.b16 %v212
        %v269 = vunpack.c.l.b16 %v213
        %v270 = vunpack.c.l.b16 %v214
        %v271 = vunpack.c.l.b16 %v215
        %v272 = vunpack.c.l.b16 %v216
        %v273 = vunpack.c.l.b16 %v217
        %v274 = vpack.c.b16 %v250, %v249
        %v275 = vpack.c.b16 %v252, %v251
        %v276 = vpack.c.b16 %v254, %v253
        %v277 = vpack.c.b16 %v256, %v255
        %v278 = vpack.c.b16 %v258, %v257
        %v279 = vpack.c.b16 %v260, %v259
        %v280 = vpack.c.b16 %v262, %v261
        %v281 = vpack.c.b16 %v264, %v263
        %v282 = vpack.c.b16 %v266, %v265
        %v283 = vpack.c.b16 %v268, %v267
        %v284 = vpack.c.b16 %v270, %v269
        %v285 = vpack.c.b16 %v272, %v271
        %v286 = vpack.c.b16 %v273, %v273
        %v289 = vunpack.c.l.b16 %v218
        %v290 = vunpack.c.l.b16 %v219
        %v291 = vpack.c.b16 %v290, %v289
        %vm293 = vcmask 130048
        %v295 = vsel %vm293, %v274, 0
        %v298 = vsel %vm293, %v275, 0
        %v301 = vsel %vm293, %v276, 0
        %v304 = vsel %vm293, %v277, 0
        %v307 = vsel %vm293, %v278, 0
        %v310 = vsel %vm293, %v279, 0
        %v313 = vsel %vm293, %v280, 0
        %v316 = vsel %vm293, %v281, 0
        %v319 = vsel %vm293, %v282, 0
        %v322 = vsel %vm293, %v283, 0
        %v325 = vsel %vm293, %v284, 0
        %v328 = vsel %vm293, %v285, 0
        %v331 = vsel %vm293, %v286, 0
        %333 = vmatpush.bf16.msra.mxu0 0
        %334 = vmatpush.bf16.msra.mxu0 0
        %335 = vmatpush.bf16.msra.mxu0 0
        %336 = vmatpush.bf16.msra.mxu0 0
        %337 = vmatpush.bf16.msra.mxu0 0
        %338 = vmatpush.bf16.msra.mxu0 0
        %339 = vmatpush.bf16.msra.mxu0 0
        %340 = vmatpush.bf16.msra.mxu0 %v291
        %341 = vmatmul.bf16.gmra.mxu0 %v295
        %v342 = vpop.f32.mrf.mxu0
        %v343 = vadd.f32 %v222, %v342
        %v344 = vpop.f32.mrf.mxu0
        %v345 = vadd.f32 %v222, %v344
        %346 = vmatmul.bf16.gmra.mxu0 %v298
        %v347 = vpop.f32.mrf.mxu0
        %v348 = vadd.f32 %v222, %v347
        %v349 = vpop.f32.mrf.mxu0
        %v350 = vadd.f32 %v222, %v349
        %351 = vmatmul.bf16.gmra.mxu0 %v301
        %v352 = vpop.f32.mrf.mxu0
        %v353 = vadd.f32 %v222, %v352
        %v354 = vpop.f32.mrf.mxu0
        %v355 = vadd.f32 %v222, %v354
        %356 = vmatmul.bf16.gmra.mxu0 %v304
        %v357 = vpop.f32.mrf.mxu0
        %v358 = vadd.f32 %v222, %v357
        %v359 = vpop.f32.mrf.mxu0
        %v360 = vadd.f32 %v222, %v359
        %361 = vmatmul.bf16.gmra.mxu0 %v307
        %v362 = vpop.f32.mrf.mxu0
        %v363 = vadd.f32 %v222, %v362
        %v364 = vpop.f32.mrf.mxu0
        %v365 = vadd.f32 %v222, %v364
        %366 = vmatmul.bf16.gmra.mxu0 %v310
        %v367 = vpop.f32.mrf.mxu0
        %v368 = vadd.f32 %v222, %v367
        %v369 = vpop.f32.mrf.mxu0
        %v370 = vadd.f32 %v222, %v369
        %371 = vmatmul.bf16.gmra.mxu0 %v313
        %v372 = vpop.f32.mrf.mxu0
        %v373 = vadd.f32 %v222, %v372
        %v374 = vpop.f32.mrf.mxu0
        %v375 = vadd.f32 %v222, %v374
        %376 = vmatmul.bf16.gmra.mxu0 %v316
        %v377 = vpop.f32.mrf.mxu0
        %v378 = vadd.f32 %v222, %v377
        %v379 = vpop.f32.mrf.mxu0
        %v380 = vadd.f32 %v222, %v379
        %381 = vmatmul.bf16.gmra.mxu0 %v319
        %v382 = vpop.f32.mrf.mxu0
        %v383 = vadd.f32 %v222, %v382
        %v384 = vpop.f32.mrf.mxu0
        %v385 = vadd.f32 %v222, %v384
        %386 = vmatmul.bf16.gmra.mxu0 %v322
        %v387 = vpop.f32.mrf.mxu0
        %v388 = vadd.f32 %v222, %v387
        %v389 = vpop.f32.mrf.mxu0
        %v390 = vadd.f32 %v222, %v389
        %391 = vmatmul.bf16.gmra.mxu0 %v325
        %v392 = vpop.f32.mrf.mxu0
        %v393 = vadd.f32 %v222, %v392
        %v394 = vpop.f32.mrf.mxu0
        %v395 = vadd.f32 %v222, %v394
        %396 = vmatmul.bf16.gmra.mxu0 %v328
        %v397 = vpop.f32.mrf.mxu0
        %v398 = vadd.f32 %v222, %v397
        %v399 = vpop.f32.mrf.mxu0
        %v400 = vadd.f32 %v222, %v399
        %401 = vmatmul.bf16.gmra.mxu0 %v331
        %v402 = vpop.f32.mrf.mxu0
        %v403 = vadd.f32 %v222, %v402
        %v404 = vpop.f32.mrf.mxu0
        %405 = vdwg.mxu0
        %v406 = vmax.f32 %v343, 0.0
        %v407 = vmax.f32 %v345, 0.0
        %v408 = vmax.f32 %v348, 0.0
        %v409 = vmax.f32 %v350, 0.0
        %v410 = vmax.f32 %v353, 0.0
        %v411 = vmax.f32 %v355, 0.0
        %v412 = vmax.f32 %v358, 0.0
        %v413 = vmax.f32 %v360, 0.0
        %v414 = vmax.f32 %v363, 0.0
        %v415 = vmax.f32 %v365, 0.0
        %v416 = vmax.f32 %v368, 0.0
        %v417 = vmax.f32 %v370, 0.0
        %v418 = vmax.f32 %v373, 0.0
        %v419 = vmax.f32 %v375, 0.0
        %v420 = vmax.f32 %v378, 0.0
        %v421 = vmax.f32 %v380, 0.0
        %v422 = vmax.f32 %v383, 0.0
        %v423 = vmax.f32 %v385, 0.0
        %v424 = vmax.f32 %v388, 0.0
        %v425 = vmax.f32 %v390, 0.0
        %v426 = vmax.f32 %v393, 0.0
        %v427 = vmax.f32 %v395, 0.0
        %v428 = vmax.f32 %v398, 0.0
        %v429 = vmax.f32 %v400, 0.0
        %v430 = vmax.f32 %v403, 0.0
        %v431 = vpack.c.bf16 %v406, %v406
        %v432 = vpack.c.bf16 %v407, %v407
        %v433 = vpack.c.bf16 %v408, %v408
        %v434 = vpack.c.bf16 %v409, %v409
        %v435 = vpack.c.bf16 %v410, %v410
        %v436 = vpack.c.bf16 %v411, %v411
        %v437 = vpack.c.bf16 %v412, %v412
        %v438 = vpack.c.bf16 %v413, %v413
        %v439 = vpack.c.bf16 %v414, %v414
        %v440 = vpack.c.bf16 %v415, %v415
        %v441 = vpack.c.bf16 %v416, %v416
        %v442 = vpack.c.bf16 %v417, %v417
        %v443 = vpack.c.bf16 %v418, %v418
        %v444 = vpack.c.bf16 %v419, %v419
        %v445 = vpack.c.bf16 %v420, %v420
        %v446 = vpack.c.bf16 %v421, %v421
        %v447 = vpack.c.bf16 %v422, %v422
        %v448 = vpack.c.bf16 %v423, %v423
        %v449 = vpack.c.bf16 %v424, %v424
        %v450 = vpack.c.bf16 %v425, %v425
        %v451 = vpack.c.bf16 %v426, %v426
        %v452 = vpack.c.bf16 %v427, %v427
        %v453 = vpack.c.bf16 %v428, %v428
        %v454 = vpack.c.bf16 %v429, %v429
        %v455 = vpack.c.bf16 %v430, %v430
        %vm456 = vcmask 125952
        %457 = vst.msk [vmem:[%s172] sm:$0xf] %vm456, %v431
        %458 = vst.msk [vmem:[%s172 + $0x4] sm:$0xf] %vm456, %v432
        %459 = vst.msk [vmem:[%s172 + $0x8] sm:$0xf] %vm456, %v433
        %460 = vst.msk [vmem:[%s172 + $0xc] sm:$0xf] %vm456, %v434
        %461 = vst.msk [vmem:[%s172 + $0x10] sm:$0xf] %vm456, %v435
        %462 = vst.msk [vmem:[%s172 + $0x14] sm:$0xf] %vm456, %v436
        %463 = vst.msk [vmem:[%s172 + $0x18] sm:$0xf] %vm456, %v437
        %464 = vst.msk [vmem:[%s172 + $0x1c] sm:$0xf] %vm456, %v438
        %465 = vst.msk [vmem:[%s172 + $0x20] sm:$0xf] %vm456, %v439
        %466 = vst.msk [vmem:[%s172 + $0x24] sm:$0xf] %vm456, %v440
        %467 = vst.msk [vmem:[%s172 + $0x28] sm:$0xf] %vm456, %v441
        %468 = vst.msk [vmem:[%s172 + $0x2c] sm:$0xf] %vm456, %v442
        %469 = vst.msk [vmem:[%s172 + $0x30] sm:$0xf] %vm456, %v443
        %470 = vst.msk [vmem:[%s172 + $0x34] sm:$0xf] %vm456, %v444
        %471 = vst.msk [vmem:[%s172 + $0x38] sm:$0xf] %vm456, %v445
        %472 = vst.msk [vmem:[%s172 + $0x3c] sm:$0xf] %vm456, %v446
        %473 = vst.msk [vmem:[%s172 + $0x40] sm:$0xf] %vm456, %v447
        %474 = vst.msk [vmem:[%s172 + $0x44] sm:$0xf] %vm456, %v448
        %475 = vst.msk [vmem:[%s172 + $0x48] sm:$0xf] %vm456, %v449
        %476 = vst.msk [vmem:[%s172 + $0x4c] sm:$0xf] %vm456, %v450
        %477 = vst.msk [vmem:[%s172 + $0x50] sm:$0xf] %vm456, %v451
        %478 = vst.msk [vmem:[%s172 + $0x54] sm:$0xf] %vm456, %v452
        %479 = vst.msk [vmem:[%s172 + $0x58] sm:$0xf] %vm456, %v453
        %480 = vst.msk [vmem:[%s172 + $0x5c] sm:$0xf] %vm456, %v454
        %481 = vst.msk [vmem:[%s172 + $0x60] sm:$0xf] %vm456, %v455
        %s482 = sand.u32 %s90, 1
        %s483 = sand.u32 %s90, 1
        %s484 = smul.addr %s483, 100
        %s485 = scalar_lea.vmem [#allocation2], %s484
        // Predicated region
        $region33: #{cnnnet_forward.3} parent=31 // pred_check
          %p486 = pneg %p100
        $region34: #{cnnnet_forward.3} parent=31 // pred_check_branch
          %488 = sbr.rel (%p486) target = $region36
        $region35: #{cnnnet_forward.3} parent=31 // pred_region
          %s489 = smul.u32 25, %s14
          %s490 = ssub.s32 49, %s489
          %p491 = scmp.lt.s32.totalorder %s490, 25
          %s492 = scalar_select %p491, %s490, 25
          %s493 = smul.u32 4, %s492
          %p494 = scmp.ne.s32.totalorder 0, %s493
          %s495 = smul.addr %s489, 4
          %s496 = scalar_lea.vmem %s3, %s495
          // Predicated region
          $region37: #{cnnnet_forward.3} parent=35 // pred_check
            %p497 = pneg %p494
          $region38: #{cnnnet_forward.3} parent=35 // pred_check_branch
            %499 = sbr.rel (%p497) target = $region40
          $region39: #{cnnnet_forward.3} parent=35 // pred_region
            // Predicated region
            $region41: #{cnnnet_forward.3} parent=39 // pred_check
              _
            $region42: #{cnnnet_forward.3} parent=39 // pred_check_branch
              %501 = sbr.rel target = $region44
            $region43: #{cnnnet_forward.3} parent=39 // pred_region
              // Predicated region
              $region63: #{cnnnet_forward.3} parent=43 // pred_check
                _
              $region64: #{cnnnet_forward.3} parent=43 // pred_check_branch
                %600 = sbr.rel (0) target = $region66
              $region65: #{cnnnet_forward.3} parent=43 // pred_region
                %s602 = ssub.s32 16, 1
                %s603 = sdiv.u32.pop %s492, 25
                %s604 = srem.u32.pop %s492, 25
                // While loop
                $region67: #{cnnnet_forward.3} parent=65 // loop_pre_header
                  _
                $region68: #{cnnnet_forward.3} parent=65 // loop_header
                  %s606 = sphi 0, %s608
                  %p607 = scmp.ge.s32.totalorder %s606, %s603
                  %s611 = sphi 0, %s666
                  %s612 = sphi %s485, %s669
                  %s613 = sphi %s496, %s670
                $region69: #{cnnnet_forward.3} parent=65 // loop_header_branch
                  %610 = sbr.rel (%p607) target = $region73
                $region70: #{cnnnet_forward.3} parent=65 // loop_body
                  %v614 = vld [vmem:[%s612] sm:%s602]
                  %615 = vst [vmem:[%s613] sm:%s602] %v614
                  %v616 = vld [vmem:[%s612 + $0x4] sm:%s602]
                  %617 = vst [vmem:[%s613 + $0x4] sm:%s602] %v616
                  %v618 = vld [vmem:[%s612 + $0x8] sm:%s602]
                  %619 = vst [vmem:[%s613 + $0x8] sm:%s602] %v618
                  %v620 = vld [vmem:[%s612 + $0xc] sm:%s602]
                  %621 = vst [vmem:[%s613 + $0xc] sm:%s602] %v620
                  %v622 = vld [vmem:[%s612 + $0x10] sm:%s602]
                  %623 = vst [vmem:[%s613 + $0x10] sm:%s602] %v622
                  %v624 = vld [vmem:[%s612 + $0x14] sm:%s602]
                  %625 = vst [vmem:[%s613 + $0x14] sm:%s602] %v624
                  %v626 = vld [vmem:[%s612 + $0x18] sm:%s602]
                  %627 = vst [vmem:[%s613 + $0x18] sm:%s602] %v626
                  %v628 = vld [vmem:[%s612 + $0x1c] sm:%s602]
                  %629 = vst [vmem:[%s613 + $0x1c] sm:%s602] %v628
                  %v630 = vld [vmem:[%s612 + $0x20] sm:%s602]
                  %631 = vst [vmem:[%s613 + $0x20] sm:%s602] %v630
                  %v632 = vld [vmem:[%s612 + $0x24] sm:%s602]
                  %633 = vst [vmem:[%s613 + $0x24] sm:%s602] %v632
                  %v634 = vld [vmem:[%s612 + $0x28] sm:%s602]
                  %635 = vst [vmem:[%s613 + $0x28] sm:%s602] %v634
                  %v636 = vld [vmem:[%s612 + $0x2c] sm:%s602]
                  %637 = vst [vmem:[%s613 + $0x2c] sm:%s602] %v636
                  %v638 = vld [vmem:[%s612 + $0x30] sm:%s602]
                  %639 = vst [vmem:[%s613 + $0x30] sm:%s602] %v638
                  %v640 = vld [vmem:[%s612 + $0x34] sm:%s602]
                  %641 = vst [vmem:[%s613 + $0x34] sm:%s602] %v640
                  %v642 = vld [vmem:[%s612 + $0x38] sm:%s602]
                  %643 = vst [vmem:[%s613 + $0x38] sm:%s602] %v642
                  %v644 = vld [vmem:[%s612 + $0x3c] sm:%s602]
                  %645 = vst [vmem:[%s613 + $0x3c] sm:%s602] %v644
                  %v646 = vld [vmem:[%s612 + $0x40] sm:%s602]
                  %647 = vst [vmem:[%s613 + $0x40] sm:%s602] %v646
                  %v648 = vld [vmem:[%s612 + $0x44] sm:%s602]
                  %649 = vst [vmem:[%s613 + $0x44] sm:%s602] %v648
                  %v650 = vld [vmem:[%s612 + $0x48] sm:%s602]
                  %651 = vst [vmem:[%s613 + $0x48] sm:%s602] %v650
                  %v652 = vld [vmem:[%s612 + $0x4c] sm:%s602]
                  %653 = vst [vmem:[%s613 + $0x4c] sm:%s602] %v652
                  %v654 = vld [vmem:[%s612 + $0x50] sm:%s602]
                  %655 = vst [vmem:[%s613 + $0x50] sm:%s602] %v654
                  %v656 = vld [vmem:[%s612 + $0x54] sm:%s602]
                  %657 = vst [vmem:[%s613 + $0x54] sm:%s602] %v656
                  %v658 = vld [vmem:[%s612 + $0x58] sm:%s602]
                  %659 = vst [vmem:[%s613 + $0x58] sm:%s602] %v658
                  %v660 = vld [vmem:[%s612 + $0x5c] sm:%s602]
                  %661 = vst [vmem:[%s613 + $0x5c] sm:%s602] %v660
                  %v662 = vld [vmem:[%s612 + $0x60] sm:%s602]
                  %663 = vst [vmem:[%s613 + $0x60] sm:%s602] %v662
                  %s664 = sadd.s32 1, %s611
                  %p665 = scmp.ge.s32.totalorder %s664, %s603
                  %s666 = scalar_select %p665, 0, %s664
                  %s667 = smul.u32 %s666, 100
                  %s668 = smul.u32 %s666, 100
                  %s669 = scalar_lea.vmem %s485, %s667 [#allocation2]
                  %s670 = scalar_lea.vmem %s496, %s668
                $region71: #{cnnnet_forward.3} parent=65 // loop_footer
                  %s608 = sadd.s32 %s606, 1
                $region72: #{cnnnet_forward.3} parent=65 // loop_footer_branch
                  %605 = sbr.rel target = $region68
                $region73: #{cnnnet_forward.3} parent=65 // loop_exit
                  _
                %s671 = sdiv.u32.pop %s492, 25
                %s672 = srem.u32.pop %s492, 25
                %s673 = smul.u32 %s671, 25
                %s674 = smul.u32 4, %s673
                %s675 = scalar_lea.vmem %s485, %s674 [#allocation2]
                %s676 = smul.u32 4, %s673
                %s677 = scalar_lea.vmem %s496, %s676
                // While loop
                $region74: #{cnnnet_forward.3} parent=65 // loop_pre_header
                  _
                $region75: #{cnnnet_forward.3} parent=65 // loop_header
                  %s679 = sphi 0, %s681
                  %p680 = scmp.ge.s32.totalorder %s679, %s672
                  %s684 = sphi 0, %s691
                  %s685 = sphi %s675, %s694
                  %s686 = sphi %s677, %s695
                $region76: #{cnnnet_forward.3} parent=65 // loop_header_branch
                  %683 = sbr.rel (%p680) target = $region80
                $region77: #{cnnnet_forward.3} parent=65 // loop_body
                  %v687 = vld [vmem:[%s685] sm:%s602]
                  %688 = vst [vmem:[%s686] sm:%s602] %v687
                  %s689 = sadd.s32 1, %s684
                  %p690 = scmp.ge.s32.totalorder %s689, %s672
                  %s691 = scalar_select %p690, 0, %s689
                  %s692 = smul.u32 %s691, 4
                  %s693 = smul.u32 %s691, 4
                  %s694 = scalar_lea.vmem %s675, %s692 [#allocation2]
                  %s695 = scalar_lea.vmem %s677, %s693
                $region78: #{cnnnet_forward.3} parent=65 // loop_footer
                  %s681 = sadd.s32 %s679, 1
                $region79: #{cnnnet_forward.3} parent=65 // loop_footer_branch
                  %678 = sbr.rel target = $region75
                $region80: #{cnnnet_forward.3} parent=65 // loop_exit
                  _
              $region66: #{cnnnet_forward.3} parent=43 // pred_fallthru
                _
            $region44: #{cnnnet_forward.3} parent=39 // pred_fallthru
              _
            // Predicated region
            $region45: #{cnnnet_forward.3} parent=39 // pred_check
              _
            $region46: #{cnnnet_forward.3} parent=39 // pred_check_branch
              %503 = sbr.rel (0) target = $region48
            $region47: #{cnnnet_forward.3} parent=39 // pred_region
              %s505 = ssub.s32 16, 1
              %s506 = sdiv.u32.pop %s492, 25
              %s507 = srem.u32.pop %s492, 25
              // While loop
              $region49: #{cnnnet_forward.3} parent=47 // loop_pre_header
                _
              $region50: #{cnnnet_forward.3} parent=47 // loop_header
                %s509 = sphi 0, %s511
                %p510 = scmp.ge.s32.totalorder %s509, %s506
                %s514 = sphi 0, %s569
                %s515 = sphi %s485, %s572
                %s516 = sphi %s496, %s573
              $region51: #{cnnnet_forward.3} parent=47 // loop_header_branch
                %513 = sbr.rel (%p510) target = $region55
              $region52: #{cnnnet_forward.3} parent=47 // loop_body
                %v517 = vld [vmem:[%s515] sm:%s505]
                %518 = vst [vmem:[%s516] sm:%s505] %v517
                %v519 = vld [vmem:[%s515 + $0x4] sm:%s505]
                %520 = vst [vmem:[%s516 + $0x4] sm:%s505] %v519
                %v521 = vld [vmem:[%s515 + $0x8] sm:%s505]
                %522 = vst [vmem:[%s516 + $0x8] sm:%s505] %v521
                %v523 = vld [vmem:[%s515 + $0xc] sm:%s505]
                %524 = vst [vmem:[%s516 + $0xc] sm:%s505] %v523
                %v525 = vld [vmem:[%s515 + $0x10] sm:%s505]
                %526 = vst [vmem:[%s516 + $0x10] sm:%s505] %v525
                %v527 = vld [vmem:[%s515 + $0x14] sm:%s505]
                %528 = vst [vmem:[%s516 + $0x14] sm:%s505] %v527
                %v529 = vld [vmem:[%s515 + $0x18] sm:%s505]
                %530 = vst [vmem:[%s516 + $0x18] sm:%s505] %v529
                %v531 = vld [vmem:[%s515 + $0x1c] sm:%s505]
                %532 = vst [vmem:[%s516 + $0x1c] sm:%s505] %v531
                %v533 = vld [vmem:[%s515 + $0x20] sm:%s505]
                %534 = vst [vmem:[%s516 + $0x20] sm:%s505] %v533
                %v535 = vld [vmem:[%s515 + $0x24] sm:%s505]
                %536 = vst [vmem:[%s516 + $0x24] sm:%s505] %v535
                %v537 = vld [vmem:[%s515 + $0x28] sm:%s505]
                %538 = vst [vmem:[%s516 + $0x28] sm:%s505] %v537
                %v539 = vld [vmem:[%s515 + $0x2c] sm:%s505]
                %540 = vst [vmem:[%s516 + $0x2c] sm:%s505] %v539
                %v541 = vld [vmem:[%s515 + $0x30] sm:%s505]
                %542 = vst [vmem:[%s516 + $0x30] sm:%s505] %v541
                %v543 = vld [vmem:[%s515 + $0x34] sm:%s505]
                %544 = vst [vmem:[%s516 + $0x34] sm:%s505] %v543
                %v545 = vld [vmem:[%s515 + $0x38] sm:%s505]
                %546 = vst [vmem:[%s516 + $0x38] sm:%s505] %v545
                %v547 = vld [vmem:[%s515 + $0x3c] sm:%s505]
                %548 = vst [vmem:[%s516 + $0x3c] sm:%s505] %v547
                %v549 = vld [vmem:[%s515 + $0x40] sm:%s505]
                %550 = vst [vmem:[%s516 + $0x40] sm:%s505] %v549
                %v551 = vld [vmem:[%s515 + $0x44] sm:%s505]
                %552 = vst [vmem:[%s516 + $0x44] sm:%s505] %v551
                %v553 = vld [vmem:[%s515 + $0x48] sm:%s505]
                %554 = vst [vmem:[%s516 + $0x48] sm:%s505] %v553
                %v555 = vld [vmem:[%s515 + $0x4c] sm:%s505]
                %556 = vst [vmem:[%s516 + $0x4c] sm:%s505] %v555
                %v557 = vld [vmem:[%s515 + $0x50] sm:%s505]
                %558 = vst [vmem:[%s516 + $0x50] sm:%s505] %v557
                %v559 = vld [vmem:[%s515 + $0x54] sm:%s505]
                %560 = vst [vmem:[%s516 + $0x54] sm:%s505] %v559
                %v561 = vld [vmem:[%s515 + $0x58] sm:%s505]
                %562 = vst [vmem:[%s516 + $0x58] sm:%s505] %v561
                %v563 = vld [vmem:[%s515 + $0x5c] sm:%s505]
                %564 = vst [vmem:[%s516 + $0x5c] sm:%s505] %v563
                %v565 = vld [vmem:[%s515 + $0x60] sm:%s505]
                %566 = vst [vmem:[%s516 + $0x60] sm:%s505] %v565
                %s567 = sadd.s32 1, %s514
                %p568 = scmp.ge.s32.totalorder %s567, %s506
                %s569 = scalar_select %p568, 0, %s567
                %s570 = smul.u32 %s569, 100
                %s571 = smul.u32 %s569, 100
                %s572 = scalar_lea.vmem %s485, %s570 [#allocation2]
                %s573 = scalar_lea.vmem %s496, %s571
              $region53: #{cnnnet_forward.3} parent=47 // loop_footer
                %s511 = sadd.s32 %s509, 1
              $region54: #{cnnnet_forward.3} parent=47 // loop_footer_branch
                %508 = sbr.rel target = $region50
              $region55: #{cnnnet_forward.3} parent=47 // loop_exit
                _
              %s574 = sdiv.u32.pop %s492, 25
              %s575 = srem.u32.pop %s492, 25
              %s576 = smul.u32 %s574, 25
              %s577 = smul.u32 4, %s576
              %s578 = scalar_lea.vmem %s485, %s577 [#allocation2]
              %s579 = smul.u32 4, %s576
              %s580 = scalar_lea.vmem %s496, %s579
              // While loop
              $region56: #{cnnnet_forward.3} parent=47 // loop_pre_header
                _
              $region57: #{cnnnet_forward.3} parent=47 // loop_header
                %s582 = sphi 0, %s584
                %p583 = scmp.ge.s32.totalorder %s582, %s575
                %s587 = sphi 0, %s594
                %s588 = sphi %s578, %s597
                %s589 = sphi %s580, %s598
              $region58: #{cnnnet_forward.3} parent=47 // loop_header_branch
                %586 = sbr.rel (%p583) target = $region62
              $region59: #{cnnnet_forward.3} parent=47 // loop_body
                %v590 = vld [vmem:[%s588] sm:%s505]
                %591 = vst [vmem:[%s589] sm:%s505] %v590
                %s592 = sadd.s32 1, %s587
                %p593 = scmp.ge.s32.totalorder %s592, %s575
                %s594 = scalar_select %p593, 0, %s592
                %s595 = smul.u32 %s594, 4
                %s596 = smul.u32 %s594, 4
                %s597 = scalar_lea.vmem %s578, %s595 [#allocation2]
                %s598 = scalar_lea.vmem %s580, %s596
              $region60: #{cnnnet_forward.3} parent=47 // loop_footer
                %s584 = sadd.s32 %s582, 1
              $region61: #{cnnnet_forward.3} parent=47 // loop_footer_branch
                %581 = sbr.rel target = $region57
              $region62: #{cnnnet_forward.3} parent=47 // loop_exit
                _
            $region48: #{cnnnet_forward.3} parent=39 // pred_fallthru
              _
          $region40: #{cnnnet_forward.3} parent=35 // pred_fallthru
            _
          %696 = vnop
        $region36: #{cnnnet_forward.3} parent=31 // pred_fallthru
          _
      $region32: #{cnnnet_forward.3} parent=5 // pred_fallthru
        _
      %p697 = scmp.le.s32.totalorder 2, %s9
      // Predicated region
      $region81: #{cnnnet_forward.3} parent=5 // pred_check
        %p698 = pneg %p697
      $region82: #{cnnnet_forward.3} parent=5 // pred_check_branch
        %700 = sbr.rel (%p698) target = $region84
      $region83: #{cnnnet_forward.3} parent=5 // pred_region
        %s701 = ssub.s32 %s9, 2
        // Predicated region
        $region85: #{cnnnet_forward.3} parent=83 // pred_check
          %p702 = pneg %p106
        $region86: #{cnnnet_forward.3} parent=83 // pred_check_branch
          %704 = sbr.rel (%p702) target = $region88
        $region87: #{cnnnet_forward.3} parent=83 // pred_region
          %s705 = sand.u32 %s91, 1
          %s706 = sand.u32 %s91, 1
          %s707 = smul.addr %s706, 100
          %s708 = scalar_lea.vmem [#allocation2], %s707
        $region88: #{cnnnet_forward.3} parent=83 // pred_fallthru
          _
      $region84: #{cnnnet_forward.3} parent=5 // pred_fallthru
        _
    $region6: #{cnnnet_forward.3} parent=1 // loop_footer
      %s13 = sadd.s32 1, %s9
    $region7: #{cnnnet_forward.3} parent=1 // loop_footer_branch
      %8 = sbr.rel target = $region3
    $region8: #{cnnnet_forward.3} parent=1 // loop_exit
      _

// kernel: cnnnet_forward.4
$region0: #{cnnnet_forward.4}
  #allocation0 [shape = 'u32[]', space=smem, size = 0x4, offset = 0x4, fixed_abs, tag = 'smem constant byte address 0x4 - core index']
  #allocation1 [shape = 'u32[72,128]{1,0:T(1,128)}', space=vmem, size = 0x9000, scoped, tag = 'internal scratch']
  %s0 = inlined_call_operand.vmem [shape: bf16[98,144], index: 0, kind: input, shape index: {}]
  %s1 = inlined_call_operand.vmem [shape: bf16[144,32], index: 1, kind: input, shape index: {}]
  %s2 = inlined_call_operand.vmem [shape: f32[1,32], index: 2, kind: input, shape index: {}]
  %s3 = inlined_call_operand.vmem [shape: bf16[98,32], index: 3, kind: output, shape index: {}]
  %s4 = sld [smem:[#allocation0]]
  $region22: #{cnnnet_forward.4} parent=0
    _
  %s6 = ssub.s32 1, %s4
  %s7 = scalar_select 0, %s6, %s4
  // Predicated region
  $region2: #{cnnnet_forward.4} parent=0 // pred_check
    _
  $region3: #{cnnnet_forward.4} parent=0 // pred_check_branch
    %9 = sbr.rel (0) target = $region5
  $region4: #{cnnnet_forward.4} parent=0 // pred_region
    _
  $region5: #{cnnnet_forward.4} parent=0 // pred_fallthru
    _
  // Predicated region
  $region6: #{cnnnet_forward.4} parent=0 // pred_check
    _
  $region7: #{cnnnet_forward.4} parent=0 // pred_check_branch
    %11 = sbr.rel (0) target = $region9
  $region8: #{cnnnet_forward.4} parent=0 // pred_region
    _
  $region9: #{cnnnet_forward.4} parent=0 // pred_fallthru
    _
  // Predicated region
  $region10: #{cnnnet_forward.4} parent=0 // pred_check
    _
  $region11: #{cnnnet_forward.4} parent=0 // pred_check_branch
    %13 = sbr.rel (0) target = $region13
  $region12: #{cnnnet_forward.4} parent=0 // pred_region
    _
  $region13: #{cnnnet_forward.4} parent=0 // pred_fallthru
    _
  %v15 = vld [vmem:[%s0] sm:$0xff]
  %v16 = vld [vmem:[%s0 + $0x8] sm:$0xff]
  %v17 = vld [vmem:[%s0 + $0x10] sm:$0xff]
  %v18 = vld [vmem:[%s0 + $0x18] sm:$0xff]
  %v19 = vld [vmem:[%s0 + $0x20] sm:$0xff]
  %v20 = vld [vmem:[%s0 + $0x28] sm:$0xff]
  %v21 = vld [vmem:[%s0 + $0x30] sm:$0xff]
  %v22 = vld [vmem:[%s0 + $0x38] sm:$0xff]
  %v23 = vld [vmem:[%s0 + $0x40] sm:$0xff]
  %v24 = vld [vmem:[%s0 + $0x48] sm:$0xff]
  %v25 = vld [vmem:[%s0 + $0x50] sm:$0xff]
  %v26 = vld [vmem:[%s0 + $0x58] sm:$0xff]
  %v27 = vld [vmem:[%s0 + $0x60] sm:$0x11]
  %v28 = vld [vmem:[%s1] sm:$0xf]
  %v29 = vld [vmem:[%s1 + $0x4] sm:$0xf]
  %v30 = vld [vmem:[%s1 + $0x8] sm:$0xf]
  %v31 = vld [vmem:[%s1 + $0xc] sm:$0xf]
  %v32 = vld [vmem:[%s1 + $0x10] sm:$0xf]
  %v33 = vld [vmem:[%s1 + $0x14] sm:$0xf]
  %v34 = vld [vmem:[%s1 + $0x18] sm:$0xf]
  %v35 = vld [vmem:[%s1 + $0x1c] sm:$0xf]
  %v36 = vld [vmem:[%s1 + $0x20] sm:$0xf]
  %v37 = vld [vmem:[%s1 + $0x24] sm:$0xf]
  %v38 = vld [vmem:[%s1 + $0x28] sm:$0xf]
  %v39 = vld [vmem:[%s1 + $0x2c] sm:$0xf]
  %v40 = vld [vmem:[%s1 + $0x30] sm:$0xf]
  %v41 = vld [vmem:[%s1 + $0x34] sm:$0xf]
  %v42 = vld [vmem:[%s1 + $0x38] sm:$0xf]
  %v43 = vld [vmem:[%s1 + $0x3c] sm:$0xf]
  %v44 = vld [vmem:[%s1 + $0x40] sm:$0xf]
  %v45 = vld [vmem:[%s1 + $0x44] sm:$0xf]
  %v46 = vld [vmem:[%s2] sm:$0x1]
  %v48 = vperm.slane %v46, 0
  %v63 = vunpack.c.l.b16 %v15
  %v64 = vunpack.c.h.b16 %v15
  %v65 = vunpack.c.l.b16 %v16
  %v66 = vunpack.c.h.b16 %v16
  %v67 = vunpack.c.l.b16 %v17
  %v68 = vunpack.c.h.b16 %v17
  %v69 = vunpack.c.l.b16 %v18
  %v70 = vunpack.c.h.b16 %v18
  %v71 = vunpack.c.l.b16 %v19
  %v72 = vunpack.c.h.b16 %v19
  %v73 = vunpack.c.l.b16 %v20
  %v74 = vunpack.c.h.b16 %v20
  %v75 = vunpack.c.l.b16 %v21
  %v76 = vunpack.c.h.b16 %v21
  %v77 = vunpack.c.l.b16 %v22
  %v78 = vunpack.c.h.b16 %v22
  %v79 = vunpack.c.l.b16 %v23
  %v80 = vunpack.c.h.b16 %v23
  %v81 = vunpack.c.l.b16 %v24
  %v82 = vunpack.c.h.b16 %v24
  %v83 = vunpack.c.l.b16 %v25
  %v84 = vunpack.c.h.b16 %v25
  %v85 = vunpack.c.l.b16 %v26
  %v86 = vunpack.c.h.b16 %v26
  %v87 = vunpack.c.l.b16 %v27
  %v88 = vunpack.c.h.b16 %v27
  %v89 = vpack.c.b16 %v65, %v63
  %v90 = vpack.c.b16 %v66, %v64
  %v91 = vpack.c.b16 %v69, %v67
  %v92 = vpack.c.b16 %v70, %v68
  %v93 = vpack.c.b16 %v73, %v71
  %v94 = vpack.c.b16 %v74, %v72
  %v95 = vpack.c.b16 %v77, %v75
  %v96 = vpack.c.b16 %v78, %v76
  %v97 = vpack.c.b16 %v81, %v79
  %v98 = vpack.c.b16 %v82, %v80
  %v99 = vpack.c.b16 %v85, %v83
  %v100 = vpack.c.b16 %v86, %v84
  %v101 = vpack.c.b16 %v87, %v87
  %v102 = vpack.c.b16 %v88, %v88
  %v128 = vunpack.c.l.b16 %v28
  %v129 = vunpack.c.l.b16 %v29
  %v130 = vunpack.c.l.b16 %v30
  %v131 = vunpack.c.l.b16 %v31
  %v132 = vunpack.c.l.b16 %v32
  %v133 = vunpack.c.l.b16 %v33
  %v134 = vunpack.c.l.b16 %v34
  %v135 = vunpack.c.l.b16 %v35
  %v136 = vunpack.c.l.b16 %v36
  %v137 = vunpack.c.l.b16 %v37
  %v138 = vunpack.c.l.b16 %v38
  %v139 = vunpack.c.l.b16 %v39
  %v140 = vunpack.c.l.b16 %v40
  %v141 = vunpack.c.l.b16 %v41
  %v142 = vunpack.c.l.b16 %v42
  %v143 = vunpack.c.l.b16 %v43
  %v144 = vunpack.c.l.b16 %v44
  %v145 = vunpack.c.l.b16 %v45
  %v146 = vpack.c.b16 %v129, %v128
  %v147 = vpack.c.b16 %v131, %v130
  %v148 = vpack.c.b16 %v133, %v132
  %v149 = vpack.c.b16 %v135, %v134
  %v150 = vpack.c.b16 %v137, %v136
  %v151 = vpack.c.b16 %v139, %v138
  %v152 = vpack.c.b16 %v141, %v140
  %v153 = vpack.c.b16 %v143, %v142
  %v154 = vpack.c.b16 %v145, %v144
  %vm164 = vcmask 130048
  %v166 = vsel %vm164, %v90, 0
  %v169 = vsel %vm164, %v92, 0
  %v172 = vsel %vm164, %v94, 0
  %v175 = vsel %vm164, %v96, 0
  %v178 = vsel %vm164, %v98, 0
  %v181 = vsel %vm164, %v100, 0
  %v184 = vsel %vm164, %v102, 0
  %186 = vmatpush.bf16.msra.mxu0 %v153
  %187 = vmatpush.bf16.msra.mxu0 %v152
  %188 = vmatpush.bf16.msra.mxu0 %v151
  %189 = vmatpush.bf16.msra.mxu0 %v150
  %190 = vmatpush.bf16.msra.mxu0 %v149
  %191 = vmatpush.bf16.msra.mxu0 %v148
  %192 = vmatpush.bf16.msra.mxu0 %v147
  %193 = vmatpush.bf16.msra.mxu0 %v146
  %194 = vmatmul.bf16.gmra.mxu0 %v89
  %v195 = vpop.f32.mrf.mxu0
  %v196 = vadd.f32 %v48, %v195
  %v197 = vpop.f32.mrf.mxu0
  %v198 = vadd.f32 %v48, %v197
  %199 = vmatmul.bf16.gmra.mxu0 %v91
  %v200 = vpop.f32.mrf.mxu0
  %v201 = vadd.f32 %v48, %v200
  %v202 = vpop.f32.mrf.mxu0
  %v203 = vadd.f32 %v48, %v202
  %204 = vmatmul.bf16.gmra.mxu0 %v93
  %v205 = vpop.f32.mrf.mxu0
  %v206 = vadd.f32 %v48, %v205
  %v207 = vpop.f32.mrf.mxu0
  %v208 = vadd.f32 %v48, %v207
  %209 = vmatmul.bf16.gmra.mxu0 %v95
  %v210 = vpop.f32.mrf.mxu0
  %v211 = vadd.f32 %v48, %v210
  %v212 = vpop.f32.mrf.mxu0
  %v213 = vadd.f32 %v48, %v212
  %214 = vmatmul.bf16.gmra.mxu0 %v97
  %v215 = vpop.f32.mrf.mxu0
  %v216 = vadd.f32 %v48, %v215
  %v217 = vpop.f32.mrf.mxu0
  %v218 = vadd.f32 %v48, %v217
  %219 = vmatmul.bf16.gmra.mxu0 %v99
  %v220 = vpop.f32.mrf.mxu0
  %v221 = vadd.f32 %v48, %v220
  %v222 = vpop.f32.mrf.mxu0
  %v223 = vadd.f32 %v48, %v222
  %224 = vmatmul.bf16.gmra.mxu0 %v101
  %v225 = vpop.f32.mrf.mxu0
  %v226 = vadd.f32 %v48, %v225
  %v227 = vpop.f32.mrf.mxu0
  %228 = vdwg.mxu0
  %229 = vmatpush.bf16.msra.mxu0 0
  %230 = vmatpush.bf16.msra.mxu0 0
  %231 = vmatpush.bf16.msra.mxu0 0
  %232 = vmatpush.bf16.msra.mxu0 0
  %233 = vmatpush.bf16.msra.mxu0 0
  %234 = vmatpush.bf16.msra.mxu0 0
  %235 = vmatpush.bf16.msra.mxu0 0
  %236 = vmatpush.bf16.msra.mxu0 %v154
  %237 = vmatmul.bf16.gmra.mxu0 %v166
  %v238 = vpop.f32.mrf.mxu0
  %v239 = vadd.f32 %v196, %v238
  %v240 = vpop.f32.mrf.mxu0
  %v241 = vadd.f32 %v198, %v240
  %242 = vmatmul.bf16.gmra.mxu0 %v169
  %v243 = vpop.f32.mrf.mxu0
  %v244 = vadd.f32 %v201, %v243
  %v245 = vpop.f32.mrf.mxu0
  %v246 = vadd.f32 %v203, %v245
  %247 = vmatmul.bf16.gmra.mxu0 %v172
  %v248 = vpop.f32.mrf.mxu0
  %v249 = vadd.f32 %v206, %v248
  %v250 = vpop.f32.mrf.mxu0
  %v251 = vadd.f32 %v208, %v250
  %252 = vmatmul.bf16.gmra.mxu0 %v175
  %v253 = vpop.f32.mrf.mxu0
  %v254 = vadd.f32 %v211, %v253
  %v255 = vpop.f32.mrf.mxu0
  %v256 = vadd.f32 %v213, %v255
  %257 = vmatmul.bf16.gmra.mxu0 %v178
  %v258 = vpop.f32.mrf.mxu0
  %v259 = vadd.f32 %v216, %v258
  %v260 = vpop.f32.mrf.mxu0
  %v261 = vadd.f32 %v218, %v260
  %262 = vmatmul.bf16.gmra.mxu0 %v181
  %v263 = vpop.f32.mrf.mxu0
  %v264 = vadd.f32 %v221, %v263
  %v265 = vpop.f32.mrf.mxu0
  %v266 = vadd.f32 %v223, %v265
  %267 = vmatmul.bf16.gmra.mxu0 %v184
  %v268 = vpop.f32.mrf.mxu0
  %v269 = vadd.f32 %v226, %v268
  %v270 = vpop.f32.mrf.mxu0
  %271 = vdwg.mxu0
  %v272 = vmax.f32 %v239, 0.0
  %v273 = vmax.f32 %v241, 0.0
  %v274 = vmax.f32 %v244, 0.0
  %v275 = vmax.f32 %v246, 0.0
  %v276 = vmax.f32 %v249, 0.0
  %v277 = vmax.f32 %v251, 0.0
  %v278 = vmax.f32 %v254, 0.0
  %v279 = vmax.f32 %v256, 0.0
  %v280 = vmax.f32 %v259, 0.0
  %v281 = vmax.f32 %v261, 0.0
  %v282 = vmax.f32 %v264, 0.0
  %v283 = vmax.f32 %v266, 0.0
  %v284 = vmax.f32 %v269, 0.0
  %v285 = vpack.c.bf16 %v272, %v272
  %v286 = vpack.c.bf16 %v273, %v273
  %v287 = vpack.c.bf16 %v274, %v274
  %v288 = vpack.c.bf16 %v275, %v275
  %v289 = vpack.c.bf16 %v276, %v276
  %v290 = vpack.c.bf16 %v277, %v277
  %v291 = vpack.c.bf16 %v278, %v278
  %v292 = vpack.c.bf16 %v279, %v279
  %v293 = vpack.c.bf16 %v280, %v280
  %v294 = vpack.c.bf16 %v281, %v281
  %v295 = vpack.c.bf16 %v282, %v282
  %v296 = vpack.c.bf16 %v283, %v283
  %v297 = vpack.c.bf16 %v284, %v284
  %vm298 = vcmask 257024
  %299 = vst.msk [vmem:[%s3] sm:$0xf] %vm298, %v285
  %300 = vst.msk [vmem:[%s3 + $0x4] sm:$0xf] %vm298, %v286
  %301 = vst.msk [vmem:[%s3 + $0x8] sm:$0xf] %vm298, %v287
  %302 = vst.msk [vmem:[%s3 + $0xc] sm:$0xf] %vm298, %v288
  %303 = vst.msk [vmem:[%s3 + $0x10] sm:$0xf] %vm298, %v289
  %304 = vst.msk [vmem:[%s3 + $0x14] sm:$0xf] %vm298, %v290
  %305 = vst.msk [vmem:[%s3 + $0x18] sm:$0xf] %vm298, %v291
  %306 = vst.msk [vmem:[%s3 + $0x1c] sm:$0xf] %vm298, %v292
  %307 = vst.msk [vmem:[%s3 + $0x20] sm:$0xf] %vm298, %v293
  %308 = vst.msk [vmem:[%s3 + $0x24] sm:$0xf] %vm298, %v294
  %309 = vst.msk [vmem:[%s3 + $0x28] sm:$0xf] %vm298, %v295
  %310 = vst.msk [vmem:[%s3 + $0x2c] sm:$0xf] %vm298, %v296
  %vm311 = vcmask 253952
  %312 = vst.msk [vmem:[%s3 + $0x30] sm:$0x1] %vm311, %v297
  // Predicated region
  $region14: #{cnnnet_forward.4} parent=0 // pred_check
    _
  $region15: #{cnnnet_forward.4} parent=0 // pred_check_branch
    %314 = sbr.rel (0) target = $region17
  $region16: #{cnnnet_forward.4} parent=0 // pred_region
    _
  $region17: #{cnnnet_forward.4} parent=0 // pred_fallthru
    _
  // Predicated region
  $region18: #{cnnnet_forward.4} parent=0 // pred_check
    _
  $region19: #{cnnnet_forward.4} parent=0 // pred_check_branch
    %316 = sbr.rel (0) target = $region21
  $region20: #{cnnnet_forward.4} parent=0 // pred_region
    _
  $region21: #{cnnnet_forward.4} parent=0 // pred_fallthru
    _

// kernel: cnnnet_forward.5
$region0: #{cnnnet_forward.5}
  #allocation0 [shape = 'u32[]', space=smem, size = 0x4, offset = 0x4, fixed_abs, tag = 'smem constant byte address 0x4 - core index']
  #allocation1 [shape = 'u32[72,128]{1,0:T(1,128)}', space=vmem, size = 0x9000, scoped, tag = 'internal scratch']
  %s0 = inlined_call_operand.vmem [shape: bf16[16,2,288], index: 0, kind: input, shape index: {}]
  %s1 = inlined_call_operand.vmem [shape: bf16[288,64], index: 1, kind: input, shape index: {}]
  %s2 = inlined_call_operand.vmem [shape: f32[1,64], index: 2, kind: input, shape index: {}]
  %s3 = inlined_call_operand.vmem [shape: bf16[256,64], index: 3, kind: input, shape index: {}]
  %s4 = inlined_call_operand.vmem [shape: f32[1,64], index: 4, kind: input, shape index: {}]
  %s5 = inlined_call_operand.vmem [shape: f32[256,128], index: 5, kind: input, shape index: {}]
  %s6 = inlined_call_operand.vmem [shape: f32[1,128], index: 6, kind: input, shape index: {}]
  %s7 = inlined_call_operand.vmem [shape: f32[128,128], index: 7, kind: input, shape index: {}]
  %s8 = inlined_call_operand.vmem [shape: f32[1,128], index: 8, kind: input, shape index: {}]
  %s9 = inlined_call_operand.hbm [shape: f32[2,128], index: 9, kind: output, shape index: {}]
  %s10 = sld [smem:[#allocation0]]
  $region46: #{cnnnet_forward.5} parent=0
    _
  %s12 = ssub.s32 1, %s10
  %s13 = scalar_select 0, %s12, %s10
  $region1: #{cnnnet_forward.5} parent=0
    #allocation2 [shape = 'u8[1024]{0}', space=vmem, size = 0x400, scoped, tag = 'output window, operand 0, single buffered']
    #allocation3 [shape = 's32[1]{0}', space=sflag, size = 0x4, scoped, tag = 'scoped memory for cnnnet_forward.5']
    %14 = vsyncpa [#allocation3], 0
    // Predicated region
    $region2: #{cnnnet_forward.5} parent=1 // pred_check
      _
    $region3: #{cnnnet_forward.5} parent=1 // pred_check_branch
      %16 = sbr.rel (0) target = $region5
    $region4: #{cnnnet_forward.5} parent=1 // pred_region
      _
    $region5: #{cnnnet_forward.5} parent=1 // pred_fallthru
      _
    // Predicated region
    $region6: #{cnnnet_forward.5} parent=1 // pred_check
      _
    $region7: #{cnnnet_forward.5} parent=1 // pred_check_branch
      %18 = sbr.rel (0) target = $region9
    $region8: #{cnnnet_forward.5} parent=1 // pred_region
      _
    $region9: #{cnnnet_forward.5} parent=1 // pred_fallthru
      _
    // Predicated region
    $region10: #{cnnnet_forward.5} parent=1 // pred_check
      _
    $region11: #{cnnnet_forward.5} parent=1 // pred_check_branch
      %20 = sbr.rel (0) target = $region13
    $region12: #{cnnnet_forward.5} parent=1 // pred_region
      _
    $region13: #{cnnnet_forward.5} parent=1 // pred_fallthru
      _
    // Predicated region
    $region14: #{cnnnet_forward.5} parent=1 // pred_check
      _
    $region15: #{cnnnet_forward.5} parent=1 // pred_check_branch
      %22 = sbr.rel (0) target = $region17
    $region16: #{cnnnet_forward.5} parent=1 // pred_region
      _
    $region17: #{cnnnet_forward.5} parent=1 // pred_fallthru
      _
    // Predicated region
    $region18: #{cnnnet_forward.5} parent=1 // pred_check
      _
    $region19: #{cnnnet_forward.5} parent=1 // pred_check_branch
      %24 = sbr.rel (0) target = $region21
    $region20: #{cnnnet_forward.5} parent=1 // pred_region
      _
    $region21: #{cnnnet_forward.5} parent=1 // pred_fallthru
      _
    // Predicated region
    $region22: #{cnnnet_forward.5} parent=1 // pred_check
      _
    $region23: #{cnnnet_forward.5} parent=1 // pred_check_branch
      %26 = sbr.rel (0) target = $region25
    $region24: #{cnnnet_forward.5} parent=1 // pred_region
      _
    $region25: #{cnnnet_forward.5} parent=1 // pred_fallthru
      _
    // Predicated region
    $region26: #{cnnnet_forward.5} parent=1 // pred_check
      _
    $region27: #{cnnnet_forward.5} parent=1 // pred_check_branch
      %28 = sbr.rel (0) target = $region29
    $region28: #{cnnnet_forward.5} parent=1 // pred_region
      _
    $region29: #{cnnnet_forward.5} parent=1 // pred_fallthru
      _
    // Predicated region
    $region30: #{cnnnet_forward.5} parent=1 // pred_check
      _
    $region31: #{cnnnet_forward.5} parent=1 // pred_check_branch
      %30 = sbr.rel (0) target = $region33
    $region32: #{cnnnet_forward.5} parent=1 // pred_region
      _
    $region33: #{cnnnet_forward.5} parent=1 // pred_fallthru
      _
    // Predicated region
    $region34: #{cnnnet_forward.5} parent=1 // pred_check
      _
    $region35: #{cnnnet_forward.5} parent=1 // pred_check_branch
      %32 = sbr.rel (0) target = $region37
    $region36: #{cnnnet_forward.5} parent=1 // pred_region
      _
    $region37: #{cnnnet_forward.5} parent=1 // pred_fallthru
      _
    %v34 = vld [vmem:[%s1] sm:$0xf]
    %v35 = vld [vmem:[%s1 + $0x4] sm:$0xf]
    %v36 = vld [vmem:[%s1 + $0x8] sm:$0xf]
    %v37 = vld [vmem:[%s1 + $0xc] sm:$0xf]
    %v38 = vld [vmem:[%s1 + $0x10] sm:$0xf]
    %v39 = vld [vmem:[%s1 + $0x14] sm:$0xf]
    %v40 = vld [vmem:[%s1 + $0x18] sm:$0xf]
    %v41 = vld [vmem:[%s1 + $0x1c] sm:$0xf]
    %v42 = vld [vmem:[%s1 + $0x20] sm:$0xf]
    %v43 = vld [vmem:[%s1 + $0x24] sm:$0xf]
    %v44 = vld [vmem:[%s1 + $0x28] sm:$0xf]
    %v45 = vld [vmem:[%s1 + $0x2c] sm:$0xf]
    %v46 = vld [vmem:[%s1 + $0x30] sm:$0xf]
    %v47 = vld [vmem:[%s1 + $0x34] sm:$0xf]
    %v48 = vld [vmem:[%s1 + $0x38] sm:$0xf]
    %v49 = vld [vmem:[%s1 + $0x3c] sm:$0xf]
    %v50 = vld [vmem:[%s1 + $0x40] sm:$0xf]
    %v51 = vld [vmem:[%s1 + $0x44] sm:$0xf]
    %v52 = vld [vmem:[%s1 + $0x48] sm:$0xf]
    %v53 = vld [vmem:[%s1 + $0x4c] sm:$0xf]
    %v54 = vld [vmem:[%s1 + $0x50] sm:$0xf]
    %v55 = vld [vmem:[%s1 + $0x54] sm:$0xf]
    %v56 = vld [vmem:[%s1 + $0x58] sm:$0xf]
    %v57 = vld [vmem:[%s1 + $0x5c] sm:$0xf]
    %v58 = vld [vmem:[%s1 + $0x60] sm:$0xf]
    %v59 = vld [vmem:[%s1 + $0x64] sm:$0xf]
    %v60 = vld [vmem:[%s1 + $0x68] sm:$0xf]
    %v61 = vld [vmem:[%s1 + $0x6c] sm:$0xf]
    %v62 = vld [vmem:[%s1 + $0x70] sm:$0xf]
    %v63 = vld [vmem:[%s1 + $0x74] sm:$0xf]
    %v64 = vld [vmem:[%s1 + $0x78] sm:$0xf]
    %v65 = vld [vmem:[%s1 + $0x7c] sm:$0xf]
    %v66 = vld [vmem:[%s1 + $0x80] sm:$0xf]
    %v67 = vld [vmem:[%s1 + $0x84] sm:$0xf]
    %v68 = vld [vmem:[%s1 + $0x88] sm:$0xf]
    %v69 = vld [vmem:[%s1 + $0x8c] sm:$0xf]
    %v70 = vld [vmem:[%s2] sm:$0x1]
    %v71 = vld [vmem:[%s3] sm:$0xf]
    %v72 = vld [vmem:[%s3 + $0x4] sm:$0xf]
    %v73 = vld [vmem:[%s3 + $0x8] sm:$0xf]
    %v74 = vld [vmem:[%s3 + $0xc] sm:$0xf]
    %v75 = vld [vmem:[%s3 + $0x10] sm:$0xf]
    %v76 = vld [vmem:[%s3 + $0x14] sm:$0xf]
    %v77 = vld [vmem:[%s3 + $0x18] sm:$0xf]
    %v78 = vld [vmem:[%s3 + $0x1c] sm:$0xf]
    %v79 = vld [vmem:[%s3 + $0x20] sm:$0xf]
    %v80 = vld [vmem:[%s3 + $0x24] sm:$0xf]
    %v81 = vld [vmem:[%s3 + $0x28] sm:$0xf]
    %v82 = vld [vmem:[%s3 + $0x2c] sm:$0xf]
    %v83 = vld [vmem:[%s3 + $0x30] sm:$0xf]
    %v84 = vld [vmem:[%s3 + $0x34] sm:$0xf]
    %v85 = vld [vmem:[%s3 + $0x38] sm:$0xf]
    %v86 = vld [vmem:[%s3 + $0x3c] sm:$0xf]
    %v87 = vld [vmem:[%s3 + $0x40] sm:$0xf]
    %v88 = vld [vmem:[%s3 + $0x44] sm:$0xf]
    %v89 = vld [vmem:[%s3 + $0x48] sm:$0xf]
    %v90 = vld [vmem:[%s3 + $0x4c] sm:$0xf]
    %v91 = vld [vmem:[%s3 + $0x50] sm:$0xf]
    %v92 = vld [vmem:[%s3 + $0x54] sm:$0xf]
    %v93 = vld [vmem:[%s3 + $0x58] sm:$0xf]
    %v94 = vld [vmem:[%s3 + $0x5c] sm:$0xf]
    %v95 = vld [vmem:[%s3 + $0x60] sm:$0xf]
    %v96 = vld [vmem:[%s3 + $0x64] sm:$0xf]
    %v97 = vld [vmem:[%s3 + $0x68] sm:$0xf]
    %v98 = vld [vmem:[%s3 + $0x6c] sm:$0xf]
    %v99 = vld [vmem:[%s3 + $0x70] sm:$0xf]
    %v100 = vld [vmem:[%s3 + $0x74] sm:$0xf]
    %v101 = vld [vmem:[%s3 + $0x78] sm:$0xf]
    %v102 = vld [vmem:[%s3 + $0x7c] sm:$0xf]
    %v103 = vld [vmem:[%s4] sm:$0x1]
    %v104 = vld [vmem:[%s0] sm:$0x7]
    %v106 = vperm.slane %v70, 0
    %109 = vst [vmem:[#allocation1] ss:$9 sm:$0xff] %v104
    %v110 = vld [vmem:[#allocation1] sm:$0xff]
    %v111 = vld [vmem:[#allocation1 + $0x9] sm:$0xff]
    %v112 = vld [vmem:[#allocation1 + $0x12] sm:$0xff]
    %v151 = vunpack.c.l.b16 %v34
    %v152 = vunpack.c.l.b16 %v35
    %v153 = vunpack.c.l.b16 %v36
    %v154 = vunpack.c.l.b16 %v37
    %v155 = vunpack.c.l.b16 %v38
    %v156 = vunpack.c.l.b16 %v39
    %v157 = vunpack.c.l.b16 %v40
    %v158 = vunpack.c.l.b16 %v41
    %v159 = vunpack.c.l.b16 %v42
    %v160 = vunpack.c.l.b16 %v43
    %v161 = vunpack.c.l.b16 %v44
    %v162 = vunpack.c.l.b16 %v45
    %v163 = vunpack.c.l.b16 %v46
    %v164 = vunpack.c.l.b16 %v47
    %v165 = vunpack.c.l.b16 %v48
    %v166 = vunpack.c.l.b16 %v49
    %v167 = vunpack.c.l.b16 %v50
    %v168 = vunpack.c.l.b16 %v51
    %v169 = vunpack.c.l.b16 %v52
    %v170 = vunpack.c.l.b16 %v53
    %v171 = vunpack.c.l.b16 %v54
    %v172 = vunpack.c.l.b16 %v55
    %v173 = vunpack.c.l.b16 %v56
    %v174 = vunpack.c.l.b16 %v57
    %v175 = vunpack.c.l.b16 %v58
    %v176 = vunpack.c.l.b16 %v59
    %v177 = vunpack.c.l.b16 %v60
    %v178 = vunpack.c.l.b16 %v61
    %v179 = vunpack.c.l.b16 %v62
    %v180 = vunpack.c.l.b16 %v63
    %v181 = vunpack.c.l.b16 %v64
    %v182 = vunpack.c.l.b16 %v65
    %v183 = vunpack.c.l.b16 %v66
    %v184 = vunpack.c.l.b16 %v67
    %v185 = vunpack.c.l.b16 %v68
    %v186 = vunpack.c.l.b16 %v69
    %v187 = vpack.c.b16 %v152, %v151
    %v188 = vpack.c.b16 %v154, %v153
    %v189 = vpack.c.b16 %v156, %v155
    %v190 = vpack.c.b16 %v158, %v157
    %v191 = vpack.c.b16 %v160, %v159
    %v192 = vpack.c.b16 %v162, %v161
    %v193 = vpack.c.b16 %v164, %v163
    %v194 = vpack.c.b16 %v166, %v165
    %v195 = vpack.c.b16 %v168, %v167
    %v196 = vpack.c.b16 %v170, %v169
    %v197 = vpack.c.b16 %v172, %v171
    %v198 = vpack.c.b16 %v174, %v173
    %v199 = vpack.c.b16 %v176, %v175
    %v200 = vpack.c.b16 %v178, %v177
    %v201 = vpack.c.b16 %v180, %v179
    %v202 = vpack.c.b16 %v182, %v181
    %v203 = vpack.c.b16 %v184, %v183
    %v204 = vpack.c.b16 %v186, %v185
    %vm223 = vcmask 261120
    %v224 = vsel %vm223, %v112, 0
    %226 = vmatpush.bf16.msra.mxu0 %v194
    %227 = vmatpush.bf16.msra.mxu0 %v193
    %228 = vmatpush.bf16.msra.mxu0 %v192
    %229 = vmatpush.bf16.msra.mxu0 %v191
    %230 = vmatpush.bf16.msra.mxu0 %v190
    %231 = vmatpush.bf16.msra.mxu0 %v189
    %232 = vmatpush.bf16.msra.mxu0 %v188
    %233 = vmatpush.bf16.msra.mxu0 %v187
    %234 = vmatmul.bf16.gmra.mxu0 %v110
    %v235 = vpop.f32.mrf.mxu0
    %v236 = vadd.f32 %v106, %v235
    %v237 = vpop.f32.mrf.mxu0
    %238 = vdwg.mxu0
    %239 = vmatpush.bf16.msra.mxu0 %v202
    %240 = vmatpush.bf16.msra.mxu0 %v201
    %241 = vmatpush.bf16.msra.mxu0 %v200
    %242 = vmatpush.bf16.msra.mxu0 %v199
    %243 = vmatpush.bf16.msra.mxu0 %v198
    %244 = vmatpush.bf16.msra.mxu0 %v197
    %245 = vmatpush.bf16.msra.mxu0 %v196
    %246 = vmatpush.bf16.msra.mxu0 %v195
    %247 = vmatmul.bf16.gmra.mxu0 %v111
    %v248 = vpop.f32.mrf.mxu0
    %v249 = vadd.f32 %v236, %v248
    %v250 = vpop.f32.mrf.mxu0
    %251 = vdwg.mxu0
    %252 = vmatpush.bf16.msra.mxu0 0
    %253 = vmatpush.bf16.msra.mxu0 0
    %254 = vmatpush.bf16.msra.mxu0 0
    %255 = vmatpush.bf16.msra.mxu0 0
    %256 = vmatpush.bf16.msra.mxu0 0
    %257 = vmatpush.bf16.msra.mxu0 0
    %258 = vmatpush.bf16.msra.mxu0 %v204
    %259 = vmatpush.bf16.msra.mxu0 %v203
    %260 = vmatmul.bf16.gmra.mxu0 %v224
    %v261 = vpop.f32.mrf.mxu0
    %v262 = vadd.f32 %v249, %v261
    %v263 = vpop.f32.mrf.mxu0
    %264 = vdwg.mxu0
    %v265 = vmax.f32 %v262, 0.0
    %v266 = vpack.c.bf16 %v265, %v265
    %s267 = scalar_lea.vmem %s0, 3
    %v268 = vld [vmem:[%s267] sm:$0x7]
    %270 = vst [vmem:[#allocation1] ss:$9 sm:$0xff] %v268
    %v271 = vld [vmem:[#allocation1] sm:$0xff]
    %v272 = vld [vmem:[#allocation1 + $0x9] sm:$0xff]
    %v273 = vld [vmem:[#allocation1 + $0x12] sm:$0xff]
    %v276 = vsel %vm223, %v273, 0
    %278 = vmatpush.bf16.msra.mxu0 %v194
    %279 = vmatpush.bf16.msra.mxu0 %v193
    %280 = vmatpush.bf16.msra.mxu0 %v192
    %281 = vmatpush.bf16.msra.mxu0 %v191
    %282 = vmatpush.bf16.msra.mxu0 %v190
    %283 = vmatpush.bf16.msra.mxu0 %v189
    %284 = vmatpush.bf16.msra.mxu0 %v188
    %285 = vmatpush.bf16.msra.mxu0 %v187
    %286 = vmatmul.bf16.gmra.mxu0 %v271
    %v287 = vpop.f32.mrf.mxu0
    %v288 = vadd.f32 %v106, %v287
    %v289 = vpop.f32.mrf.mxu0
    %290 = vdwg.mxu0
    %291 = vmatpush.bf16.msra.mxu0 %v202
    %292 = vmatpush.bf16.msra.mxu0 %v201
    %293 = vmatpush.bf16.msra.mxu0 %v200
    %294 = vmatpush.bf16.msra.mxu0 %v199
    %295 = vmatpush.bf16.msra.mxu0 %v198
    %296 = vmatpush.bf16.msra.mxu0 %v197
    %297 = vmatpush.bf16.msra.mxu0 %v196
    %298 = vmatpush.bf16.msra.mxu0 %v195
    %299 = vmatmul.bf16.gmra.mxu0 %v272
    %v300 = vpop.f32.mrf.mxu0
    %v301 = vadd.f32 %v288, %v300
    %v302 = vpop.f32.mrf.mxu0
    %303 = vdwg.mxu0
    %304 = vmatpush.bf16.msra.mxu0 0
    %305 = vmatpush.bf16.msra.mxu0 0
    %306 = vmatpush.bf16.msra.mxu0 0
    %307 = vmatpush.bf16.msra.mxu0 0
    %308 = vmatpush.bf16.msra.mxu0 0
    %309 = vmatpush.bf16.msra.mxu0 0
    %310 = vmatpush.bf16.msra.mxu0 %v204
    %311 = vmatpush.bf16.msra.mxu0 %v203
    %312 = vmatmul.bf16.gmra.mxu0 %v276
    %v313 = vpop.f32.mrf.mxu0
    %v314 = vadd.f32 %v301, %v313
    %v315 = vpop.f32.mrf.mxu0
    %316 = vdwg.mxu0
    %v317 = vmax.f32 %v314, 0.0
    %v318 = vpack.c.bf16 %v317, %v317
    %s319 = scalar_lea.vmem %s0, 12
    %v320 = vld [vmem:[%s319] sm:$0x7]
    %322 = vst [vmem:[#allocation1] ss:$9 sm:$0xff] %v320
    %v323 = vld [vmem:[#allocation1] sm:$0xff]
    %v324 = vld [vmem:[#allocation1 + $0x9] sm:$0xff]
    %v325 = vld [vmem:[#allocation1 + $0x12] sm:$0xff]
    %v328 = vsel %vm223, %v325, 0
    %330 = vmatpush.bf16.msra.mxu0 %v194
    %331 = vmatpush.bf16.msra.mxu0 %v193
    %332 = vmatpush.bf16.msra.mxu0 %v192
    %333 = vmatpush.bf16.msra.mxu0 %v191
    %334 = vmatpush.bf16.msra.mxu0 %v190
    %335 = vmatpush.bf16.msra.mxu0 %v189
    %336 = vmatpush.bf16.msra.mxu0 %v188
    %337 = vmatpush.bf16.msra.mxu0 %v187
    %338 = vmatmul.bf16.gmra.mxu0 %v323
    %v339 = vpop.f32.mrf.mxu0
    %v340 = vadd.f32 %v106, %v339
    %v341 = vpop.f32.mrf.mxu0
    %342 = vdwg.mxu0
    %343 = vmatpush.bf16.msra.mxu0 %v202
    %344 = vmatpush.bf16.msra.mxu0 %v201
    %345 = vmatpush.bf16.msra.mxu0 %v200
    %346 = vmatpush.bf16.msra.mxu0 %v199
    %347 = vmatpush.bf16.msra.mxu0 %v198
    %348 = vmatpush.bf16.msra.mxu0 %v197
    %349 = vmatpush.bf16.msra.mxu0 %v196
    %350 = vmatpush.bf16.msra.mxu0 %v195
    %351 = vmatmul.bf16.gmra.mxu0 %v324
    %v352 = vpop.f32.mrf.mxu0
    %v353 = vadd.f32 %v340, %v352
    %v354 = vpop.f32.mrf.mxu0
    %355 = vdwg.mxu0
    %356 = vmatpush.bf16.msra.mxu0 0
    %357 = vmatpush.bf16.msra.mxu0 0
    %358 = vmatpush.bf16.msra.mxu0 0
    %359 = vmatpush.bf16.msra.mxu0 0
    %360 = vmatpush.bf16.msra.mxu0 0
    %361 = vmatpush.bf16.msra.mxu0 0
    %362 = vmatpush.bf16.msra.mxu0 %v204
    %363 = vmatpush.bf16.msra.mxu0 %v203
    %364 = vmatmul.bf16.gmra.mxu0 %v328
    %v365 = vpop.f32.mrf.mxu0
    %v366 = vadd.f32 %v353, %v365
    %v367 = vpop.f32.mrf.mxu0
    %368 = vdwg.mxu0
    %v369 = vmax.f32 %v366, 0.0
    %v370 = vpack.c.bf16 %v369, %v369
    %s371 = scalar_lea.vmem %s0, 15
    %v372 = vld [vmem:[%s371] sm:$0x7]
    %374 = vst [vmem:[#allocation1] ss:$9 sm:$0xff] %v372
    %v375 = vld [vmem:[#allocation1] sm:$0xff]
    %v376 = vld [vmem:[#allocation1 + $0x9] sm:$0xff]
    %v377 = vld [vmem:[#allocation1 + $0x12] sm:$0xff]
    %v380 = vsel %vm223, %v377, 0
    %382 = vmatpush.bf16.msra.mxu0 %v194
    %383 = vmatpush.bf16.msra.mxu0 %v193
    %384 = vmatpush.bf16.msra.mxu0 %v192
    %385 = vmatpush.bf16.msra.mxu0 %v191
    %386 = vmatpush.bf16.msra.mxu0 %v190
    %387 = vmatpush.bf16.msra.mxu0 %v189
    %388 = vmatpush.bf16.msra.mxu0 %v188
    %389 = vmatpush.bf16.msra.mxu0 %v187
    %390 = vmatmul.bf16.gmra.mxu0 %v375
    %v391 = vpop.f32.mrf.mxu0
    %v392 = vadd.f32 %v106, %v391
    %v393 = vpop.f32.mrf.mxu0
    %394 = vdwg.mxu0
    %395 = vmatpush.bf16.msra.mxu0 %v202
    %396 = vmatpush.bf16.msra.mxu0 %v201
    %397 = vmatpush.bf16.msra.mxu0 %v200
    %398 = vmatpush.bf16.msra.mxu0 %v199
    %399 = vmatpush.bf16.msra.mxu0 %v198
    %400 = vmatpush.bf16.msra.mxu0 %v197
    %401 = vmatpush.bf16.msra.mxu0 %v196
    %402 = vmatpush.bf16.msra.mxu0 %v195
    %403 = vmatmul.bf16.gmra.mxu0 %v376
    %v404 = vpop.f32.mrf.mxu0
    %v405 = vadd.f32 %v392, %v404
    %v406 = vpop.f32.mrf.mxu0
    %407 = vdwg.mxu0
    %408 = vmatpush.bf16.msra.mxu0 0
    %409 = vmatpush.bf16.msra.mxu0 0
    %410 = vmatpush.bf16.msra.mxu0 0
    %411 = vmatpush.bf16.msra.mxu0 0
    %412 = vmatpush.bf16.msra.mxu0 0
    %413 = vmatpush.bf16.msra.mxu0 0
    %414 = vmatpush.bf16.msra.mxu0 %v204
    %415 = vmatpush.bf16.msra.mxu0 %v203
    %416 = vmatmul.bf16.gmra.mxu0 %v380
    %v417 = vpop.f32.mrf.mxu0
    %v418 = vadd.f32 %v405, %v417
    %v419 = vpop.f32.mrf.mxu0
    %420 = vdwg.mxu0
    %v421 = vmax.f32 %v418, 0.0
    %v422 = vpack.c.bf16 %v421, %v421
    %v424 = vunpack.c.l.b16 %v318
    %v425 = vpack.c.b16 %v424, %v424
    %426 = vrot.lane.b32.xlu0 %v425, 64
    %v427 = vpop.permute.xlu0 %426
    %v429 = vunpack.c.l.b16 %v422
    %v430 = vpack.c.b16 %v429, %v429
    %431 = vrot.lane.b32.xlu0 %v430, 64
    %v432 = vpop.permute.xlu0 %431
    %vm433 = vcmask 523264
    %v436 = vsel %vm433, %v266, %v427
    %v440 = vsel %vm433, %v370, %v432
    %v443 = vperm.slane %v103, 0
    %v477 = vunpack.c.l.b16 %v71
    %v478 = vunpack.c.l.b16 %v72
    %v479 = vunpack.c.l.b16 %v73
    %v480 = vunpack.c.l.b16 %v74
    %v481 = vunpack.c.l.b16 %v75
    %v482 = vunpack.c.l.b16 %v76
    %v483 = vunpack.c.l.b16 %v77
    %v484 = vunpack.c.l.b16 %v78
    %v485 = vunpack.c.l.b16 %v79
    %v486 = vunpack.c.l.b16 %v80
    %v487 = vunpack.c.l.b16 %v81
    %v488 = vunpack.c.l.b16 %v82
    %v489 = vunpack.c.l.b16 %v83
    %v490 = vunpack.c.l.b16 %v84
    %v491 = vunpack.c.l.b16 %v85
    %v492 = vunpack.c.l.b16 %v86
    %v493 = vunpack.c.l.b16 %v87
    %v494 = vunpack.c.l.b16 %v88
    %v495 = vunpack.c.l.b16 %v89
    %v496 = vunpack.c.l.b16 %v90
    %v497 = vunpack.c.l.b16 %v91
    %v498 = vunpack.c.l.b16 %v92
    %v499 = vunpack.c.l.b16 %v93
    %v500 = vunpack.c.l.b16 %v94
    %v501 = vunpack.c.l.b16 %v95
    %v502 = vunpack.c.l.b16 %v96
    %v503 = vunpack.c.l.b16 %v97
    %v504 = vunpack.c.l.b16 %v98
    %v505 = vunpack.c.l.b16 %v99
    %v506 = vunpack.c.l.b16 %v100
    %v507 = vunpack.c.l.b16 %v101
    %v508 = vunpack.c.l.b16 %v102
    %v509 = vpack.c.b16 %v478, %v477
    %v510 = vpack.c.b16 %v480, %v479
    %v511 = vpack.c.b16 %v482, %v481
    %v512 = vpack.c.b16 %v484, %v483
    %v513 = vpack.c.b16 %v486, %v485
    %v514 = vpack.c.b16 %v488, %v487
    %v515 = vpack.c.b16 %v490, %v489
    %v516 = vpack.c.b16 %v492, %v491
    %v517 = vpack.c.b16 %v494, %v493
    %v518 = vpack.c.b16 %v496, %v495
    %v519 = vpack.c.b16 %v498, %v497
    %v520 = vpack.c.b16 %v500, %v499
    %v521 = vpack.c.b16 %v502, %v501
    %v522 = vpack.c.b16 %v504, %v503
    %v523 = vpack.c.b16 %v506, %v505
    %v524 = vpack.c.b16 %v508, %v507
    %541 = vmatpush.bf16.msra.mxu0 %v516
    %542 = vmatpush.bf16.msra.mxu0 %v515
    %543 = vmatpush.bf16.msra.mxu0 %v514
    %544 = vmatpush.bf16.msra.mxu0 %v513
    %545 = vmatpush.bf16.msra.mxu0 %v512
    %546 = vmatpush.bf16.msra.mxu0 %v511
    %547 = vmatpush.bf16.msra.mxu0 %v510
    %548 = vmatpush.bf16.msra.mxu0 %v509
    %549 = vmatmul.bf16.gmra.mxu0 %v436
    %v550 = vpop.f32.mrf.mxu0
    %v551 = vadd.f32 %v443, %v550
    %v552 = vpop.f32.mrf.mxu0
    %553 = vdwg.mxu0
    %554 = vmatpush.bf16.msra.mxu0 %v524
    %555 = vmatpush.bf16.msra.mxu0 %v523
    %556 = vmatpush.bf16.msra.mxu0 %v522
    %557 = vmatpush.bf16.msra.mxu0 %v521
    %558 = vmatpush.bf16.msra.mxu0 %v520
    %559 = vmatpush.bf16.msra.mxu0 %v519
    %560 = vmatpush.bf16.msra.mxu0 %v518
    %561 = vmatpush.bf16.msra.mxu0 %v517
    %562 = vmatmul.bf16.gmra.mxu0 %v440
    %v563 = vpop.f32.mrf.mxu0
    %v564 = vadd.f32 %v551, %v563
    %v565 = vpop.f32.mrf.mxu0
    %566 = vdwg.mxu0
    %v567 = vmax.f32 %v564, 0.0
    %s568 = scalar_lea.vmem %s0, 6
    %v569 = vld [vmem:[%s568] sm:$0x7]
    %571 = vst [vmem:[#allocation1] ss:$9 sm:$0xff] %v569
    %v572 = vld [vmem:[#allocation1] sm:$0xff]
    %v573 = vld [vmem:[#allocation1 + $0x9] sm:$0xff]
    %v574 = vld [vmem:[#allocation1 + $0x12] sm:$0xff]
    %v577 = vsel %vm223, %v574, 0
    %579 = vmatpush.bf16.msra.mxu0 %v194
    %580 = vmatpush.bf16.msra.mxu0 %v193
    %581 = vmatpush.bf16.msra.mxu0 %v192
    %582 = vmatpush.bf16.msra.mxu0 %v191
    %583 = vmatpush.bf16.msra.mxu0 %v190
    %584 = vmatpush.bf16.msra.mxu0 %v189
    %585 = vmatpush.bf16.msra.mxu0 %v188
    %586 = vmatpush.bf16.msra.mxu0 %v187
    %587 = vmatmul.bf16.gmra.mxu0 %v572
    %v588 = vpop.f32.mrf.mxu0
    %v589 = vadd.f32 %v106, %v588
    %v590 = vpop.f32.mrf.mxu0
    %591 = vdwg.mxu0
    %592 = vmatpush.bf16.msra.mxu0 %v202
    %593 = vmatpush.bf16.msra.mxu0 %v201
    %594 = vmatpush.bf16.msra.mxu0 %v200
    %595 = vmatpush.bf16.msra.mxu0 %v199
    %596 = vmatpush.bf16.msra.mxu0 %v198
    %597 = vmatpush.bf16.msra.mxu0 %v197
    %598 = vmatpush.bf16.msra.mxu0 %v196
    %599 = vmatpush.bf16.msra.mxu0 %v195
    %600 = vmatmul.bf16.gmra.mxu0 %v573
    %v601 = vpop.f32.mrf.mxu0
    %v602 = vadd.f32 %v589, %v601
    %v603 = vpop.f32.mrf.mxu0
    %604 = vdwg.mxu0
    %605 = vmatpush.bf16.msra.mxu0 0
    %606 = vmatpush.bf16.msra.mxu0 0
    %607 = vmatpush.bf16.msra.mxu0 0
    %608 = vmatpush.bf16.msra.mxu0 0
    %609 = vmatpush.bf16.msra.mxu0 0
    %610 = vmatpush.bf16.msra.mxu0 0
    %611 = vmatpush.bf16.msra.mxu0 %v204
    %612 = vmatpush.bf16.msra.mxu0 %v203
    %613 = vmatmul.bf16.gmra.mxu0 %v577
    %v614 = vpop.f32.mrf.mxu0
    %v615 = vadd.f32 %v602, %v614
    %v616 = vpop.f32.mrf.mxu0
    %617 = vdwg.mxu0
    %v618 = vmax.f32 %v615, 0.0
    %v619 = vpack.c.bf16 %v618, %v618
    %s620 = scalar_lea.vmem %s0, 9
    %v621 = vld [vmem:[%s620] sm:$0x7]
    %623 = vst [vmem:[#allocation1] ss:$9 sm:$0xff] %v621
    %v624 = vld [vmem:[#allocation1] sm:$0xff]
    %v625 = vld [vmem:[#allocation1 + $0x9] sm:$0xff]
    %v626 = vld [vmem:[#allocation1 + $0x12] sm:$0xff]
    %v629 = vsel %vm223, %v626, 0
    %631 = vmatpush.bf16.msra.mxu0 %v194
    %632 = vmatpush.bf16.msra.mxu0 %v193
    %633 = vmatpush.bf16.msra.mxu0 %v192
    %634 = vmatpush.bf16.msra.mxu0 %v191
    %635 = vmatpush.bf16.msra.mxu0 %v190
    %636 = vmatpush.bf16.msra.mxu0 %v189
    %637 = vmatpush.bf16.msra.mxu0 %v188
    %638 = vmatpush.bf16.msra.mxu0 %v187
    %639 = vmatmul.bf16.gmra.mxu0 %v624
    %v640 = vpop.f32.mrf.mxu0
    %v641 = vadd.f32 %v106, %v640
    %v642 = vpop.f32.mrf.mxu0
    %643 = vdwg.mxu0
    %644 = vmatpush.bf16.msra.mxu0 %v202
    %645 = vmatpush.bf16.msra.mxu0 %v201
    %646 = vmatpush.bf16.msra.mxu0 %v200
    %647 = vmatpush.bf16.msra.mxu0 %v199
    %648 = vmatpush.bf16.msra.mxu0 %v198
    %649 = vmatpush.bf16.msra.mxu0 %v197
    %650 = vmatpush.bf16.msra.mxu0 %v196
    %651 = vmatpush.bf16.msra.mxu0 %v195
    %652 = vmatmul.bf16.gmra.mxu0 %v625
    %v653 = vpop.f32.mrf.mxu0
    %v654 = vadd.f32 %v641, %v653
    %v655 = vpop.f32.mrf.mxu0
    %656 = vdwg.mxu0
    %657 = vmatpush.bf16.msra.mxu0 0
    %658 = vmatpush.bf16.msra.mxu0 0
    %659 = vmatpush.bf16.msra.mxu0 0
    %660 = vmatpush.bf16.msra.mxu0 0
    %661 = vmatpush.bf16.msra.mxu0 0
    %662 = vmatpush.bf16.msra.mxu0 0
    %663 = vmatpush.bf16.msra.mxu0 %v204
    %664 = vmatpush.bf16.msra.mxu0 %v203
    %665 = vmatmul.bf16.gmra.mxu0 %v629
    %v666 = vpop.f32.mrf.mxu0
    %v667 = vadd.f32 %v654, %v666
    %v668 = vpop.f32.mrf.mxu0
    %669 = vdwg.mxu0
    %v670 = vmax.f32 %v667, 0.0
    %v671 = vpack.c.bf16 %v670, %v670
    %s672 = scalar_lea.vmem %s0, 18
    %v673 = vld [vmem:[%s672] sm:$0x7]
    %675 = vst [vmem:[#allocation1] ss:$9 sm:$0xff] %v673
    %v676 = vld [vmem:[#allocation1] sm:$0xff]
    %v677 = vld [vmem:[#allocation1 + $0x9] sm:$0xff]
    %v678 = vld [vmem:[#allocation1 + $0x12] sm:$0xff]
    %v681 = vsel %vm223, %v678, 0
    %683 = vmatpush.bf16.msra.mxu0 %v194
    %684 = vmatpush.bf16.msra.mxu0 %v193
    %685 = vmatpush.bf16.msra.mxu0 %v192
    %686 = vmatpush.bf16.msra.mxu0 %v191
    %687 = vmatpush.bf16.msra.mxu0 %v190
    %688 = vmatpush.bf16.msra.mxu0 %v189
    %689 = vmatpush.bf16.msra.mxu0 %v188
    %690 = vmatpush.bf16.msra.mxu0 %v187
    %691 = vmatmul.bf16.gmra.mxu0 %v676
    %v692 = vpop.f32.mrf.mxu0
    %v693 = vadd.f32 %v106, %v692
    %v694 = vpop.f32.mrf.mxu0
    %695 = vdwg.mxu0
    %696 = vmatpush.bf16.msra.mxu0 %v202
    %697 = vmatpush.bf16.msra.mxu0 %v201
    %698 = vmatpush.bf16.msra.mxu0 %v200
    %699 = vmatpush.bf16.msra.mxu0 %v199
    %700 = vmatpush.bf16.msra.mxu0 %v198
    %701 = vmatpush.bf16.msra.mxu0 %v197
    %702 = vmatpush.bf16.msra.mxu0 %v196
    %703 = vmatpush.bf16.msra.mxu0 %v195
    %704 = vmatmul.bf16.gmra.mxu0 %v677
    %v705 = vpop.f32.mrf.mxu0
    %v706 = vadd.f32 %v693, %v705
    %v707 = vpop.f32.mrf.mxu0
    %708 = vdwg.mxu0
    %709 = vmatpush.bf16.msra.mxu0 0
    %710 = vmatpush.bf16.msra.mxu0 0
    %711 = vmatpush.bf16.msra.mxu0 0
    %712 = vmatpush.bf16.msra.mxu0 0
    %713 = vmatpush.bf16.msra.mxu0 0
    %714 = vmatpush.bf16.msra.mxu0 0
    %715 = vmatpush.bf16.msra.mxu0 %v204
    %716 = vmatpush.bf16.msra.mxu0 %v203
    %717 = vmatmul.bf16.gmra.mxu0 %v681
    %v718 = vpop.f32.mrf.mxu0
    %v719 = vadd.f32 %v706, %v718
    %v720 = vpop.f32.mrf.mxu0
    %721 = vdwg.mxu0
    %v722 = vmax.f32 %v719, 0.0
    %v723 = vpack.c.bf16 %v722, %v722
    %s724 = scalar_lea.vmem %s0, 21
    %v725 = vld [vmem:[%s724] sm:$0x7]
    %727 = vst [vmem:[#allocation1] ss:$9 sm:$0xff] %v725
    %v728 = vld [vmem:[#allocation1] sm:$0xff]
    %v729 = vld [vmem:[#allocation1 + $0x9] sm:$0xff]
    %v730 = vld [vmem:[#allocation1 + $0x12] sm:$0xff]
    %v733 = vsel %vm223, %v730, 0
    %735 = vmatpush.bf16.msra.mxu0 %v194
    %736 = vmatpush.bf16.msra.mxu0 %v193
    %737 = vmatpush.bf16.msra.mxu0 %v192
    %738 = vmatpush.bf16.msra.mxu0 %v191
    %739 = vmatpush.bf16.msra.mxu0 %v190
    %740 = vmatpush.bf16.msra.mxu0 %v189
    %741 = vmatpush.bf16.msra.mxu0 %v188
    %742 = vmatpush.bf16.msra.mxu0 %v187
    %743 = vmatmul.bf16.gmra.mxu0 %v728
    %v744 = vpop.f32.mrf.mxu0
    %v745 = vadd.f32 %v106, %v744
    %v746 = vpop.f32.mrf.mxu0
    %747 = vdwg.mxu0
    %748 = vmatpush.bf16.msra.mxu0 %v202
    %749 = vmatpush.bf16.msra.mxu0 %v201
    %750 = vmatpush.bf16.msra.mxu0 %v200
    %751 = vmatpush.bf16.msra.mxu0 %v199
    %752 = vmatpush.bf16.msra.mxu0 %v198
    %753 = vmatpush.bf16.msra.mxu0 %v197
    %754 = vmatpush.bf16.msra.mxu0 %v196
    %755 = vmatpush.bf16.msra.mxu0 %v195
    %756 = vmatmul.bf16.gmra.mxu0 %v729
    %v757 = vpop.f32.mrf.mxu0
    %v758 = vadd.f32 %v745, %v757
    %v759 = vpop.f32.mrf.mxu0
    %760 = vdwg.mxu0
    %761 = vmatpush.bf16.msra.mxu0 0
    %762 = vmatpush.bf16.msra.mxu0 0
    %763 = vmatpush.bf16.msra.mxu0 0
    %764 = vmatpush.bf16.msra.mxu0 0
    %765 = vmatpush.bf16.msra.mxu0 0
    %766 = vmatpush.bf16.msra.mxu0 0
    %767 = vmatpush.bf16.msra.mxu0 %v204
    %768 = vmatpush.bf16.msra.mxu0 %v203
    %769 = vmatmul.bf16.gmra.mxu0 %v733
    %v770 = vpop.f32.mrf.mxu0
    %v771 = vadd.f32 %v758, %v770
    %v772 = vpop.f32.mrf.mxu0
    %773 = vdwg.mxu0
    %v774 = vmax.f32 %v771, 0.0
    %v775 = vpack.c.bf16 %v774, %v774
    %v777 = vunpack.c.l.b16 %v671
    %v778 = vpack.c.b16 %v777, %v777
    %779 = vrot.lane.b32.xlu0 %v778, 64
    %v780 = vpop.permute.xlu0 %779
    %v782 = vunpack.c.l.b16 %v775
    %v783 = vpack.c.b16 %v782, %v782
    %784 = vrot.lane.b32.xlu0 %v783, 64
    %v785 = vpop.permute.xlu0 %784
    %v788 = vsel %vm433, %v619, %v780
    %v792 = vsel %vm433, %v723, %v785
    %794 = vmatpush.bf16.msra.mxu0 %v516
    %795 = vmatpush.bf16.msra.mxu0 %v515
    %796 = vmatpush.bf16.msra.mxu0 %v514
    %797 = vmatpush.bf16.msra.mxu0 %v513
    %798 = vmatpush.bf16.msra.mxu0 %v512
    %799 = vmatpush.bf16.msra.mxu0 %v511
    %800 = vmatpush.bf16.msra.mxu0 %v510
    %801 = vmatpush.bf16.msra.mxu0 %v509
    %802 = vmatmul.bf16.gmra.mxu0 %v788
    %v803 = vpop.f32.mrf.mxu0
    %v804 = vadd.f32 %v443, %v803
    %v805 = vpop.f32.mrf.mxu0
    %806 = vdwg.mxu0
    %807 = vmatpush.bf16.msra.mxu0 %v524
    %808 = vmatpush.bf16.msra.mxu0 %v523
    %809 = vmatpush.bf16.msra.mxu0 %v522
    %810 = vmatpush.bf16.msra.mxu0 %v521
    %811 = vmatpush.bf16.msra.mxu0 %v520
    %812 = vmatpush.bf16.msra.mxu0 %v519
    %813 = vmatpush.bf16.msra.mxu0 %v518
    %814 = vmatpush.bf16.msra.mxu0 %v517
    %815 = vmatmul.bf16.gmra.mxu0 %v792
    %v816 = vpop.f32.mrf.mxu0
    %v817 = vadd.f32 %v804, %v816
    %v818 = vpop.f32.mrf.mxu0
    %819 = vdwg.mxu0
    %v820 = vmax.f32 %v817, 0.0
    %s821 = scalar_lea.vmem %s0, 24
    %v822 = vld [vmem:[%s821] sm:$0x7]
    %824 = vst [vmem:[#allocation1] ss:$9 sm:$0xff] %v822
    %v825 = vld [vmem:[#allocation1] sm:$0xff]
    %v826 = vld [vmem:[#allocation1 + $0x9] sm:$0xff]
    %v827 = vld [vmem:[#allocation1 + $0x12] sm:$0xff]
    %v830 = vsel %vm223, %v827, 0
    %832 = vmatpush.bf16.msra.mxu0 %v194
    %833 = vmatpush.bf16.msra.mxu0 %v193
    %834 = vmatpush.bf16.msra.mxu0 %v192
    %835 = vmatpush.bf16.msra.mxu0 %v191
    %836 = vmatpush.bf16.msra.mxu0 %v190
    %837 = vmatpush.bf16.msra.mxu0 %v189
    %838 = vmatpush.bf16.msra.mxu0 %v188
    %839 = vmatpush.bf16.msra.mxu0 %v187
    %840 = vmatmul.bf16.gmra.mxu0 %v825
    %v841 = vpop.f32.mrf.mxu0
    %v842 = vadd.f32 %v106, %v841
    %v843 = vpop.f32.mrf.mxu0
    %844 = vdwg.mxu0
    %845 = vmatpush.bf16.msra.mxu0 %v202
    %846 = vmatpush.bf16.msra.mxu0 %v201
    %847 = vmatpush.bf16.msra.mxu0 %v200
    %848 = vmatpush.bf16.msra.mxu0 %v199
    %849 = vmatpush.bf16.msra.mxu0 %v198
    %850 = vmatpush.bf16.msra.mxu0 %v197
    %851 = vmatpush.bf16.msra.mxu0 %v196
    %852 = vmatpush.bf16.msra.mxu0 %v195
    %853 = vmatmul.bf16.gmra.mxu0 %v826
    %v854 = vpop.f32.mrf.mxu0
    %v855 = vadd.f32 %v842, %v854
    %v856 = vpop.f32.mrf.mxu0
    %857 = vdwg.mxu0
    %858 = vmatpush.bf16.msra.mxu0 0
    %859 = vmatpush.bf16.msra.mxu0 0
    %860 = vmatpush.bf16.msra.mxu0 0
    %861 = vmatpush.bf16.msra.mxu0 0
    %862 = vmatpush.bf16.msra.mxu0 0
    %863 = vmatpush.bf16.msra.mxu0 0
    %864 = vmatpush.bf16.msra.mxu0 %v204
    %865 = vmatpush.bf16.msra.mxu0 %v203
    %866 = vmatmul.bf16.gmra.mxu0 %v830
    %v867 = vpop.f32.mrf.mxu0
    %v868 = vadd.f32 %v855, %v867
    %v869 = vpop.f32.mrf.mxu0
    %870 = vdwg.mxu0
    %v871 = vmax.f32 %v868, 0.0
    %v872 = vpack.c.bf16 %v871, %v871
    %s873 = scalar_lea.vmem %s0, 27
    %v874 = vld [vmem:[%s873] sm:$0x7]
    %876 = vst [vmem:[#allocation1] ss:$9 sm:$0xff] %v874
    %v877 = vld [vmem:[#allocation1] sm:$0xff]
    %v878 = vld [vmem:[#allocation1 + $0x9] sm:$0xff]
    %v879 = vld [vmem:[#allocation1 + $0x12] sm:$0xff]
    %v882 = vsel %vm223, %v879, 0
    %884 = vmatpush.bf16.msra.mxu0 %v194
    %885 = vmatpush.bf16.msra.mxu0 %v193
    %886 = vmatpush.bf16.msra.mxu0 %v192
    %887 = vmatpush.bf16.msra.mxu0 %v191
    %888 = vmatpush.bf16.msra.mxu0 %v190
    %889 = vmatpush.bf16.msra.mxu0 %v189
    %890 = vmatpush.bf16.msra.mxu0 %v188
    %891 = vmatpush.bf16.msra.mxu0 %v187
    %892 = vmatmul.bf16.gmra.mxu0 %v877
    %v893 = vpop.f32.mrf.mxu0
    %v894 = vadd.f32 %v106, %v893
    %v895 = vpop.f32.mrf.mxu0
    %896 = vdwg.mxu0
    %897 = vmatpush.bf16.msra.mxu0 %v202
    %898 = vmatpush.bf16.msra.mxu0 %v201
    %899 = vmatpush.bf16.msra.mxu0 %v200
    %900 = vmatpush.bf16.msra.mxu0 %v199
    %901 = vmatpush.bf16.msra.mxu0 %v198
    %902 = vmatpush.bf16.msra.mxu0 %v197
    %903 = vmatpush.bf16.msra.mxu0 %v196
    %904 = vmatpush.bf16.msra.mxu0 %v195
    %905 = vmatmul.bf16.gmra.mxu0 %v878
    %v906 = vpop.f32.mrf.mxu0
    %v907 = vadd.f32 %v894, %v906
    %v908 = vpop.f32.mrf.mxu0
    %909 = vdwg.mxu0
    %910 = vmatpush.bf16.msra.mxu0 0
    %911 = vmatpush.bf16.msra.mxu0 0
    %912 = vmatpush.bf16.msra.mxu0 0
    %913 = vmatpush.bf16.msra.mxu0 0
    %914 = vmatpush.bf16.msra.mxu0 0
    %915 = vmatpush.bf16.msra.mxu0 0
    %916 = vmatpush.bf16.msra.mxu0 %v204
    %917 = vmatpush.bf16.msra.mxu0 %v203
    %918 = vmatmul.bf16.gmra.mxu0 %v882
    %v919 = vpop.f32.mrf.mxu0
    %v920 = vadd.f32 %v907, %v919
    %v921 = vpop.f32.mrf.mxu0
    %922 = vdwg.mxu0
    %v923 = vmax.f32 %v920, 0.0
    %v924 = vpack.c.bf16 %v923, %v923
    %s925 = scalar_lea.vmem %s0, 36
    %v926 = vld [vmem:[%s925] sm:$0x7]
    %928 = vst [vmem:[#allocation1] ss:$9 sm:$0xff] %v926
    %v929 = vld [vmem:[#allocation1] sm:$0xff]
    %v930 = vld [vmem:[#allocation1 + $0x9] sm:$0xff]
    %v931 = vld [vmem:[#allocation1 + $0x12] sm:$0xff]
    %v934 = vsel %vm223, %v931, 0
    %936 = vmatpush.bf16.msra.mxu0 %v194
    %937 = vmatpush.bf16.msra.mxu0 %v193
    %938 = vmatpush.bf16.msra.mxu0 %v192
    %939 = vmatpush.bf16.msra.mxu0 %v191
    %940 = vmatpush.bf16.msra.mxu0 %v190
    %941 = vmatpush.bf16.msra.mxu0 %v189
    %942 = vmatpush.bf16.msra.mxu0 %v188
    %943 = vmatpush.bf16.msra.mxu0 %v187
    %944 = vmatmul.bf16.gmra.mxu0 %v929
    %v945 = vpop.f32.mrf.mxu0
    %v946 = vadd.f32 %v106, %v945
    %v947 = vpop.f32.mrf.mxu0
    %948 = vdwg.mxu0
    %949 = vmatpush.bf16.msra.mxu0 %v202
    %950 = vmatpush.bf16.msra.mxu0 %v201
    %951 = vmatpush.bf16.msra.mxu0 %v200
    %952 = vmatpush.bf16.msra.mxu0 %v199
    %953 = vmatpush.bf16.msra.mxu0 %v198
    %954 = vmatpush.bf16.msra.mxu0 %v197
    %955 = vmatpush.bf16.msra.mxu0 %v196
    %956 = vmatpush.bf16.msra.mxu0 %v195
    %957 = vmatmul.bf16.gmra.mxu0 %v930
    %v958 = vpop.f32.mrf.mxu0
    %v959 = vadd.f32 %v946, %v958
    %v960 = vpop.f32.mrf.mxu0
    %961 = vdwg.mxu0
    %962 = vmatpush.bf16.msra.mxu0 0
    %963 = vmatpush.bf16.msra.mxu0 0
    %964 = vmatpush.bf16.msra.mxu0 0
    %965 = vmatpush.bf16.msra.mxu0 0
    %966 = vmatpush.bf16.msra.mxu0 0
    %967 = vmatpush.bf16.msra.mxu0 0
    %968 = vmatpush.bf16.msra.mxu0 %v204
    %969 = vmatpush.bf16.msra.mxu0 %v203
    %970 = vmatmul.bf16.gmra.mxu0 %v934
    %v971 = vpop.f32.mrf.mxu0
    %v972 = vadd.f32 %v959, %v971
    %v973 = vpop.f32.mrf.mxu0
    %974 = vdwg.mxu0
    %v975 = vmax.f32 %v972, 0.0
    %v976 = vpack.c.bf16 %v975, %v975
    %s977 = scalar_lea.vmem %s0, 39
    %v978 = vld [vmem:[%s977] sm:$0x7]
    %980 = vst [vmem:[#allocation1] ss:$9 sm:$0xff] %v978
    %v981 = vld [vmem:[#allocation1] sm:$0xff]
    %v982 = vld [vmem:[#allocation1 + $0x9] sm:$0xff]
    %v983 = vld [vmem:[#allocation1 + $0x12] sm:$0xff]
    %v986 = vsel %vm223, %v983, 0
    %988 = vmatpush.bf16.msra.mxu0 %v194
    %989 = vmatpush.bf16.msra.mxu0 %v193
    %990 = vmatpush.bf16.msra.mxu0 %v192
    %991 = vmatpush.bf16.msra.mxu0 %v191
    %992 = vmatpush.bf16.msra.mxu0 %v190
    %993 = vmatpush.bf16.msra.mxu0 %v189
    %994 = vmatpush.bf16.msra.mxu0 %v188
    %995 = vmatpush.bf16.msra.mxu0 %v187
    %996 = vmatmul.bf16.gmra.mxu0 %v981
    %v997 = vpop.f32.mrf.mxu0
    %v998 = vadd.f32 %v106, %v997
    %v999 = vpop.f32.mrf.mxu0
    %1000 = vdwg.mxu0
    %1001 = vmatpush.bf16.msra.mxu0 %v202
    %1002 = vmatpush.bf16.msra.mxu0 %v201
    %1003 = vmatpush.bf16.msra.mxu0 %v200
    %1004 = vmatpush.bf16.msra.mxu0 %v199
    %1005 = vmatpush.bf16.msra.mxu0 %v198
    %1006 = vmatpush.bf16.msra.mxu0 %v197
    %1007 = vmatpush.bf16.msra.mxu0 %v196
    %1008 = vmatpush.bf16.msra.mxu0 %v195
    %1009 = vmatmul.bf16.gmra.mxu0 %v982
    %v1010 = vpop.f32.mrf.mxu0
    %v1011 = vadd.f32 %v998, %v1010
    %v1012 = vpop.f32.mrf.mxu0
    %1013 = vdwg.mxu0
    %1014 = vmatpush.bf16.msra.mxu0 0
    %1015 = vmatpush.bf16.msra.mxu0 0
    %1016 = vmatpush.bf16.msra.mxu0 0
    %1017 = vmatpush.bf16.msra.mxu0 0
    %1018 = vmatpush.bf16.msra.mxu0 0
    %1019 = vmatpush.bf16.msra.mxu0 0
    %1020 = vmatpush.bf16.msra.mxu0 %v204
    %1021 = vmatpush.bf16.msra.mxu0 %v203
    %1022 = vmatmul.bf16.gmra.mxu0 %v986
    %v1023 = vpop.f32.mrf.mxu0
    %v1024 = vadd.f32 %v1011, %v1023
    %v1025 = vpop.f32.mrf.mxu0
    %1026 = vdwg.mxu0
    %v1027 = vmax.f32 %v1024, 0.0
    %v1028 = vpack.c.bf16 %v1027, %v1027
    %v1030 = vunpack.c.l.b16 %v924
    %v1031 = vpack.c.b16 %v1030, %v1030
    %1032 = vrot.lane.b32.xlu0 %v1031, 64
    %v1033 = vpop.permute.xlu0 %1032
    %v1035 = vunpack.c.l.b16 %v1028
    %v1036 = vpack.c.b16 %v1035, %v1035
    %1037 = vrot.lane.b32.xlu0 %v1036, 64
    %v1038 = vpop.permute.xlu0 %1037
    %v1041 = vsel %vm433, %v872, %v1033
    %v1045 = vsel %vm433, %v976, %v1038
    %1047 = vmatpush.bf16.msra.mxu0 %v516
    %1048 = vmatpush.bf16.msra.mxu0 %v515
    %1049 = vmatpush.bf16.msra.mxu0 %v514
    %1050 = vmatpush.bf16.msra.mxu0 %v513
    %1051 = vmatpush.bf16.msra.mxu0 %v512
    %1052 = vmatpush.bf16.msra.mxu0 %v511
    %1053 = vmatpush.bf16.msra.mxu0 %v510
    %1054 = vmatpush.bf16.msra.mxu0 %v509
    %1055 = vmatmul.bf16.gmra.mxu0 %v1041
    %v1056 = vpop.f32.mrf.mxu0
    %v1057 = vadd.f32 %v443, %v1056
    %v1058 = vpop.f32.mrf.mxu0
    %1059 = vdwg.mxu0
    %1060 = vmatpush.bf16.msra.mxu0 %v524
    %1061 = vmatpush.bf16.msra.mxu0 %v523
    %1062 = vmatpush.bf16.msra.mxu0 %v522
    %1063 = vmatpush.bf16.msra.mxu0 %v521
    %1064 = vmatpush.bf16.msra.mxu0 %v520
    %1065 = vmatpush.bf16.msra.mxu0 %v519
    %1066 = vmatpush.bf16.msra.mxu0 %v518
    %1067 = vmatpush.bf16.msra.mxu0 %v517
    %1068 = vmatmul.bf16.gmra.mxu0 %v1045
    %v1069 = vpop.f32.mrf.mxu0
    %v1070 = vadd.f32 %v1057, %v1069
    %v1071 = vpop.f32.mrf.mxu0
    %1072 = vdwg.mxu0
    %v1073 = vmax.f32 %v1070, 0.0
    %s1074 = scalar_lea.vmem %s0, 30
    %v1075 = vld [vmem:[%s1074] sm:$0x7]
    %1077 = vst [vmem:[#allocation1] ss:$9 sm:$0xff] %v1075
    %v1078 = vld [vmem:[#allocation1] sm:$0xff]
    %v1079 = vld [vmem:[#allocation1 + $0x9] sm:$0xff]
    %v1080 = vld [vmem:[#allocation1 + $0x12] sm:$0xff]
    %v1083 = vsel %vm223, %v1080, 0
    %1085 = vmatpush.bf16.msra.mxu0 %v194
    %1086 = vmatpush.bf16.msra.mxu0 %v193
    %1087 = vmatpush.bf16.msra.mxu0 %v192
    %1088 = vmatpush.bf16.msra.mxu0 %v191
    %1089 = vmatpush.bf16.msra.mxu0 %v190
    %1090 = vmatpush.bf16.msra.mxu0 %v189
    %1091 = vmatpush.bf16.msra.mxu0 %v188
    %1092 = vmatpush.bf16.msra.mxu0 %v187
    %1093 = vmatmul.bf16.gmra.mxu0 %v1078
    %v1094 = vpop.f32.mrf.mxu0
    %v1095 = vadd.f32 %v106, %v1094
    %v1096 = vpop.f32.mrf.mxu0
    %1097 = vdwg.mxu0
    %1098 = vmatpush.bf16.msra.mxu0 %v202
    %1099 = vmatpush.bf16.msra.mxu0 %v201
    %1100 = vmatpush.bf16.msra.mxu0 %v200
    %1101 = vmatpush.bf16.msra.mxu0 %v199
    %1102 = vmatpush.bf16.msra.mxu0 %v198
    %1103 = vmatpush.bf16.msra.mxu0 %v197
    %1104 = vmatpush.bf16.msra.mxu0 %v196
    %1105 = vmatpush.bf16.msra.mxu0 %v195
    %1106 = vmatmul.bf16.gmra.mxu0 %v1079
    %v1107 = vpop.f32.mrf.mxu0
    %v1108 = vadd.f32 %v1095, %v1107
    %v1109 = vpop.f32.mrf.mxu0
    %1110 = vdwg.mxu0
    %1111 = vmatpush.bf16.msra.mxu0 0
    %1112 = vmatpush.bf16.msra.mxu0 0
    %1113 = vmatpush.bf16.msra.mxu0 0
    %1114 = vmatpush.bf16.msra.mxu0 0
    %1115 = vmatpush.bf16.msra.mxu0 0
    %1116 = vmatpush.bf16.msra.mxu0 0
    %1117 = vmatpush.bf16.msra.mxu0 %v204
    %1118 = vmatpush.bf16.msra.mxu0 %v203
    %1119 = vmatmul.bf16.gmra.mxu0 %v1083
    %v1120 = vpop.f32.mrf.mxu0
    %v1121 = vadd.f32 %v1108, %v1120
    %v1122 = vpop.f32.mrf.mxu0
    %1123 = vdwg.mxu0
    %v1124 = vmax.f32 %v1121, 0.0
    %v1125 = vpack.c.bf16 %v1124, %v1124
    %s1126 = scalar_lea.vmem %s0, 33
    %v1127 = vld [vmem:[%s1126] sm:$0x7]
    %1129 = vst [vmem:[#allocation1] ss:$9 sm:$0xff] %v1127
    %v1130 = vld [vmem:[#allocation1] sm:$0xff]
    %v1131 = vld [vmem:[#allocation1 + $0x9] sm:$0xff]
    %v1132 = vld [vmem:[#allocation1 + $0x12] sm:$0xff]
    %v1135 = vsel %vm223, %v1132, 0
    %1137 = vmatpush.bf16.msra.mxu0 %v194
    %1138 = vmatpush.bf16.msra.mxu0 %v193
    %1139 = vmatpush.bf16.msra.mxu0 %v192
    %1140 = vmatpush.bf16.msra.mxu0 %v191
    %1141 = vmatpush.bf16.msra.mxu0 %v190
    %1142 = vmatpush.bf16.msra.mxu0 %v189
    %1143 = vmatpush.bf16.msra.mxu0 %v188
    %1144 = vmatpush.bf16.msra.mxu0 %v187
    %1145 = vmatmul.bf16.gmra.mxu0 %v1130
    %v1146 = vpop.f32.mrf.mxu0
    %v1147 = vadd.f32 %v106, %v1146
    %v1148 = vpop.f32.mrf.mxu0
    %1149 = vdwg.mxu0
    %1150 = vmatpush.bf16.msra.mxu0 %v202
    %1151 = vmatpush.bf16.msra.mxu0 %v201
    %1152 = vmatpush.bf16.msra.mxu0 %v200
    %1153 = vmatpush.bf16.msra.mxu0 %v199
    %1154 = vmatpush.bf16.msra.mxu0 %v198
    %1155 = vmatpush.bf16.msra.mxu0 %v197
    %1156 = vmatpush.bf16.msra.mxu0 %v196
    %1157 = vmatpush.bf16.msra.mxu0 %v195
    %1158 = vmatmul.bf16.gmra.mxu0 %v1131
    %v1159 = vpop.f32.mrf.mxu0
    %v1160 = vadd.f32 %v1147, %v1159
    %v1161 = vpop.f32.mrf.mxu0
    %1162 = vdwg.mxu0
    %1163 = vmatpush.bf16.msra.mxu0 0
    %1164 = vmatpush.bf16.msra.mxu0 0
    %1165 = vmatpush.bf16.msra.mxu0 0
    %1166 = vmatpush.bf16.msra.mxu0 0
    %1167 = vmatpush.bf16.msra.mxu0 0
    %1168 = vmatpush.bf16.msra.mxu0 0
    %1169 = vmatpush.bf16.msra.mxu0 %v204
    %1170 = vmatpush.bf16.msra.mxu0 %v203
    %1171 = vmatmul.bf16.gmra.mxu0 %v1135
    %v1172 = vpop.f32.mrf.mxu0
    %v1173 = vadd.f32 %v1160, %v1172
    %v1174 = vpop.f32.mrf.mxu0
    %1175 = vdwg.mxu0
    %v1176 = vmax.f32 %v1173, 0.0
    %v1177 = vpack.c.bf16 %v1176, %v1176
    %s1178 = scalar_lea.vmem %s0, 42
    %v1179 = vld [vmem:[%s1178] sm:$0x7]
    %1181 = vst [vmem:[#allocation1] ss:$9 sm:$0xff] %v1179
    %v1182 = vld [vmem:[#allocation1] sm:$0xff]
    %v1183 = vld [vmem:[#allocation1 + $0x9] sm:$0xff]
    %v1184 = vld [vmem:[#allocation1 + $0x12] sm:$0xff]
    %v1187 = vsel %vm223, %v1184, 0
    %1189 = vmatpush.bf16.msra.mxu0 %v194
    %1190 = vmatpush.bf16.msra.mxu0 %v193
    %1191 = vmatpush.bf16.msra.mxu0 %v192
    %1192 = vmatpush.bf16.msra.mxu0 %v191
    %1193 = vmatpush.bf16.msra.mxu0 %v190
    %1194 = vmatpush.bf16.msra.mxu0 %v189
    %1195 = vmatpush.bf16.msra.mxu0 %v188
    %1196 = vmatpush.bf16.msra.mxu0 %v187
    %1197 = vmatmul.bf16.gmra.mxu0 %v1182
    %v1198 = vpop.f32.mrf.mxu0
    %v1199 = vadd.f32 %v106, %v1198
    %v1200 = vpop.f32.mrf.mxu0
    %1201 = vdwg.mxu0
    %1202 = vmatpush.bf16.msra.mxu0 %v202
    %1203 = vmatpush.bf16.msra.mxu0 %v201
    %1204 = vmatpush.bf16.msra.mxu0 %v200
    %1205 = vmatpush.bf16.msra.mxu0 %v199
    %1206 = vmatpush.bf16.msra.mxu0 %v198
    %1207 = vmatpush.bf16.msra.mxu0 %v197
    %1208 = vmatpush.bf16.msra.mxu0 %v196
    %1209 = vmatpush.bf16.msra.mxu0 %v195
    %1210 = vmatmul.bf16.gmra.mxu0 %v1183
    %v1211 = vpop.f32.mrf.mxu0
    %v1212 = vadd.f32 %v1199, %v1211
    %v1213 = vpop.f32.mrf.mxu0
    %1214 = vdwg.mxu0
    %1215 = vmatpush.bf16.msra.mxu0 0
    %1216 = vmatpush.bf16.msra.mxu0 0
    %1217 = vmatpush.bf16.msra.mxu0 0
    %1218 = vmatpush.bf16.msra.mxu0 0
    %1219 = vmatpush.bf16.msra.mxu0 0
    %1220 = vmatpush.bf16.msra.mxu0 0
    %1221 = vmatpush.bf16.msra.mxu0 %v204
    %1222 = vmatpush.bf16.msra.mxu0 %v203
    %1223 = vmatmul.bf16.gmra.mxu0 %v1187
    %v1224 = vpop.f32.mrf.mxu0
    %v1225 = vadd.f32 %v1212, %v1224
    %v1226 = vpop.f32.mrf.mxu0
    %1227 = vdwg.mxu0
    %v1228 = vmax.f32 %v1225, 0.0
    %v1229 = vpack.c.bf16 %v1228, %v1228
    %s1230 = scalar_lea.vmem %s0, 45
    %v1231 = vld [vmem:[%s1230] sm:$0x7]
    %1233 = vst [vmem:[#allocation1] ss:$9 sm:$0xff] %v1231
    %v1234 = vld [vmem:[#allocation1] sm:$0xff]
    %v1235 = vld [vmem:[#allocation1 + $0x9] sm:$0xff]
    %v1236 = vld [vmem:[#allocation1 + $0x12] sm:$0xff]
    %v1239 = vsel %vm223, %v1236, 0
    %1241 = vmatpush.bf16.msra.mxu0 %v194
    %1242 = vmatpush.bf16.msra.mxu0 %v193
    %1243 = vmatpush.bf16.msra.mxu0 %v192
    %1244 = vmatpush.bf16.msra.mxu0 %v191
    %1245 = vmatpush.bf16.msra.mxu0 %v190
    %1246 = vmatpush.bf16.msra.mxu0 %v189
    %1247 = vmatpush.bf16.msra.mxu0 %v188
    %1248 = vmatpush.bf16.msra.mxu0 %v187
    %1249 = vmatmul.bf16.gmra.mxu0 %v1234
    %v1250 = vpop.f32.mrf.mxu0
    %v1251 = vadd.f32 %v106, %v1250
    %v1252 = vpop.f32.mrf.mxu0
    %1253 = vdwg.mxu0
    %1254 = vmatpush.bf16.msra.mxu0 %v202
    %1255 = vmatpush.bf16.msra.mxu0 %v201
    %1256 = vmatpush.bf16.msra.mxu0 %v200
    %1257 = vmatpush.bf16.msra.mxu0 %v199
    %1258 = vmatpush.bf16.msra.mxu0 %v198
    %1259 = vmatpush.bf16.msra.mxu0 %v197
    %1260 = vmatpush.bf16.msra.mxu0 %v196
    %1261 = vmatpush.bf16.msra.mxu0 %v195
    %1262 = vmatmul.bf16.gmra.mxu0 %v1235
    %v1263 = vpop.f32.mrf.mxu0
    %v1264 = vadd.f32 %v1251, %v1263
    %v1265 = vpop.f32.mrf.mxu0
    %1266 = vdwg.mxu0
    %1267 = vmatpush.bf16.msra.mxu0 0
    %1268 = vmatpush.bf16.msra.mxu0 0
    %1269 = vmatpush.bf16.msra.mxu0 0
    %1270 = vmatpush.bf16.msra.mxu0 0
    %1271 = vmatpush.bf16.msra.mxu0 0
    %1272 = vmatpush.bf16.msra.mxu0 0
    %1273 = vmatpush.bf16.msra.mxu0 %v204
    %1274 = vmatpush.bf16.msra.mxu0 %v203
    %1275 = vmatmul.bf16.gmra.mxu0 %v1239
    %v1276 = vpop.f32.mrf.mxu0
    %v1277 = vadd.f32 %v1264, %v1276
    %v1278 = vpop.f32.mrf.mxu0
    %1279 = vdwg.mxu0
    %v1280 = vmax.f32 %v1277, 0.0
    %v1281 = vpack.c.bf16 %v1280, %v1280
    %v1283 = vunpack.c.l.b16 %v1177
    %v1284 = vpack.c.b16 %v1283, %v1283
    %1285 = vrot.lane.b32.xlu0 %v1284, 64
    %v1286 = vpop.permute.xlu0 %1285
    %v1288 = vunpack.c.l.b16 %v1281
    %v1289 = vpack.c.b16 %v1288, %v1288
    %1290 = vrot.lane.b32.xlu0 %v1289, 64
    %v1291 = vpop.permute.xlu0 %1290
    %v1294 = vsel %vm433, %v1125, %v1286
    %v1298 = vsel %vm433, %v1229, %v1291
    %1300 = vmatpush.bf16.msra.mxu0 %v516
    %1301 = vmatpush.bf16.msra.mxu0 %v515
    %1302 = vmatpush.bf16.msra.mxu0 %v514
    %1303 = vmatpush.bf16.msra.mxu0 %v513
    %1304 = vmatpush.bf16.msra.mxu0 %v512
    %1305 = vmatpush.bf16.msra.mxu0 %v511
    %1306 = vmatpush.bf16.msra.mxu0 %v510
    %1307 = vmatpush.bf16.msra.mxu0 %v509
    %1308 = vmatmul.bf16.gmra.mxu0 %v1294
    %v1309 = vpop.f32.mrf.mxu0
    %v1310 = vadd.f32 %v443, %v1309
    %v1311 = vpop.f32.mrf.mxu0
    %1312 = vdwg.mxu0
    %1313 = vmatpush.bf16.msra.mxu0 %v524
    %1314 = vmatpush.bf16.msra.mxu0 %v523
    %1315 = vmatpush.bf16.msra.mxu0 %v522
    %1316 = vmatpush.bf16.msra.mxu0 %v521
    %1317 = vmatpush.bf16.msra.mxu0 %v520
    %1318 = vmatpush.bf16.msra.mxu0 %v519
    %1319 = vmatpush.bf16.msra.mxu0 %v518
    %1320 = vmatpush.bf16.msra.mxu0 %v517
    %1321 = vmatmul.bf16.gmra.mxu0 %v1298
    %v1322 = vpop.f32.mrf.mxu0
    %v1323 = vadd.f32 %v1310, %v1322
    %v1324 = vpop.f32.mrf.mxu0
    %1325 = vdwg.mxu0
    %v1326 = vmax.f32 %v1323, 0.0
    %1328 = vrot.lane.b32.xlu0 %v820, 64
    %v1329 = vpop.permute.xlu0 %1328
    %1332 = vrot.lane.b32.xlu0 %v1326, 64
    %v1333 = vpop.permute.xlu0 %1332
    %v1335 = vsel %vm433, %v567, %v1329
    %v1336 = vsel %vm433, %v1073, %v1333
    %v1337 = vld [vmem:[%s5] sm:$0xff]
    %v1338 = vld [vmem:[%s5 + $0x8] sm:$0xff]
    %v1339 = vld [vmem:[%s5 + $0x10] sm:$0xff]
    %v1340 = vld [vmem:[%s5 + $0x18] sm:$0xff]
    %v1341 = vld [vmem:[%s5 + $0x20] sm:$0xff]
    %v1342 = vld [vmem:[%s5 + $0x28] sm:$0xff]
    %v1343 = vld [vmem:[%s5 + $0x30] sm:$0xff]
    %v1344 = vld [vmem:[%s5 + $0x38] sm:$0xff]
    %v1345 = vld [vmem:[%s5 + $0x40] sm:$0xff]
    %v1346 = vld [vmem:[%s5 + $0x48] sm:$0xff]
    %v1347 = vld [vmem:[%s5 + $0x50] sm:$0xff]
    %v1348 = vld [vmem:[%s5 + $0x58] sm:$0xff]
    %v1349 = vld [vmem:[%s5 + $0x60] sm:$0xff]
    %v1350 = vld [vmem:[%s5 + $0x68] sm:$0xff]
    %v1351 = vld [vmem:[%s5 + $0x70] sm:$0xff]
    %v1352 = vld [vmem:[%s5 + $0x78] sm:$0xff]
    %v1353 = vld [vmem:[%s5 + $0x80] sm:$0xff]
    %v1354 = vld [vmem:[%s5 + $0x88] sm:$0xff]
    %v1355 = vld [vmem:[%s5 + $0x90] sm:$0xff]
    %v1356 = vld [vmem:[%s5 + $0x98] sm:$0xff]
    %v1357 = vld [vmem:[%s5 + $0xa0] sm:$0xff]
    %v1358 = vld [vmem:[%s5 + $0xa8] sm:$0xff]
    %v1359 = vld [vmem:[%s5 + $0xb0] sm:$0xff]
    %v1360 = vld [vmem:[%s5 + $0xb8] sm:$0xff]
    %v1361 = vld [vmem:[%s5 + $0xc0] sm:$0xff]
    %v1362 = vld [vmem:[%s5 + $0xc8] sm:$0xff]
    %v1363 = vld [vmem:[%s5 + $0xd0] sm:$0xff]
    %v1364 = vld [vmem:[%s5 + $0xd8] sm:$0xff]
    %v1365 = vld [vmem:[%s5 + $0xe0] sm:$0xff]
    %v1366 = vld [vmem:[%s5 + $0xe8] sm:$0xff]
    %v1367 = vld [vmem:[%s5 + $0xf0] sm:$0xff]
    %v1368 = vld [vmem:[%s5 + $0xf8] sm:$0xff]
    %v1369 = vld [vmem:[%s6] sm:$0x1]
    %v1371 = vperm.slane %v1369, 0
    %1373 = vmatpush.msra.mxu0 %v1352
    %1374 = vmatpush.msra.mxu0 %v1351
    %1375 = vmatpush.msra.mxu0 %v1350
    %1376 = vmatpush.msra.mxu0 %v1349
    %1377 = vmatpush.msra.mxu0 %v1348
    %1378 = vmatpush.msra.mxu0 %v1347
    %1379 = vmatpush.msra.mxu0 %v1346
    %1380 = vmatpush.msra.mxu0 %v1345
    %1381 = vmatpush.msra.mxu0 %v1344
    %1382 = vmatpush.msra.mxu0 %v1343
    %1383 = vmatpush.msra.mxu0 %v1342
    %1384 = vmatpush.msra.mxu0 %v1341
    %1385 = vmatpush.msra.mxu0 %v1340
    %1386 = vmatpush.msra.mxu0 %v1339
    %1387 = vmatpush.msra.mxu0 %v1338
    %1388 = vmatpush.msra.mxu0 %v1337
    %1389 = vmatmul.f32.gmra.mxu0 %v1335
    %v1390 = vpop.f32.mrf.mxu0
    %v1391 = vadd.f32 %v1371, %v1390
    %1392 = vdwg.mxu0
    %1393 = vmatpush.msra.mxu0 %v1368
    %1394 = vmatpush.msra.mxu0 %v1367
    %1395 = vmatpush.msra.mxu0 %v1366
    %1396 = vmatpush.msra.mxu0 %v1365
    %1397 = vmatpush.msra.mxu0 %v1364
    %1398 = vmatpush.msra.mxu0 %v1363
    %1399 = vmatpush.msra.mxu0 %v1362
    %1400 = vmatpush.msra.mxu0 %v1361
    %1401 = vmatpush.msra.mxu0 %v1360
    %1402 = vmatpush.msra.mxu0 %v1359
    %1403 = vmatpush.msra.mxu0 %v1358
    %1404 = vmatpush.msra.mxu0 %v1357
    %1405 = vmatpush.msra.mxu0 %v1356
    %1406 = vmatpush.msra.mxu0 %v1355
    %1407 = vmatpush.msra.mxu0 %v1354
    %1408 = vmatpush.msra.mxu0 %v1353
    %1409 = vmatmul.f32.gmra.mxu0 %v1336
    %v1410 = vpop.f32.mrf.mxu0
    %v1411 = vadd.f32 %v1391, %v1410
    %1412 = vdwg.mxu0
    %v1413 = vld [vmem:[%s7] sm:$0xff]
    %v1414 = vld [vmem:[%s7 + $0x8] sm:$0xff]
    %v1415 = vld [vmem:[%s7 + $0x10] sm:$0xff]
    %v1416 = vld [vmem:[%s7 + $0x18] sm:$0xff]
    %v1417 = vld [vmem:[%s7 + $0x20] sm:$0xff]
    %v1418 = vld [vmem:[%s7 + $0x28] sm:$0xff]
    %v1419 = vld [vmem:[%s7 + $0x30] sm:$0xff]
    %v1420 = vld [vmem:[%s7 + $0x38] sm:$0xff]
    %v1421 = vld [vmem:[%s7 + $0x40] sm:$0xff]
    %v1422 = vld [vmem:[%s7 + $0x48] sm:$0xff]
    %v1423 = vld [vmem:[%s7 + $0x50] sm:$0xff]
    %v1424 = vld [vmem:[%s7 + $0x58] sm:$0xff]
    %v1425 = vld [vmem:[%s7 + $0x60] sm:$0xff]
    %v1426 = vld [vmem:[%s7 + $0x68] sm:$0xff]
    %v1427 = vld [vmem:[%s7 + $0x70] sm:$0xff]
    %v1428 = vld [vmem:[%s7 + $0x78] sm:$0xff]
    %v1429 = vld [vmem:[%s8] sm:$0x1]
    %v1431 = vperm.slane %v1429, 0
    %1433 = vmatpush.msra.mxu0 %v1428
    %1434 = vmatpush.msra.mxu0 %v1427
    %1435 = vmatpush.msra.mxu0 %v1426
    %1436 = vmatpush.msra.mxu0 %v1425
    %1437 = vmatpush.msra.mxu0 %v1424
    %1438 = vmatpush.msra.mxu0 %v1423
    %1439 = vmatpush.msra.mxu0 %v1422
    %1440 = vmatpush.msra.mxu0 %v1421
    %1441 = vmatpush.msra.mxu0 %v1420
    %1442 = vmatpush.msra.mxu0 %v1419
    %1443 = vmatpush.msra.mxu0 %v1418
    %1444 = vmatpush.msra.mxu0 %v1417
    %1445 = vmatpush.msra.mxu0 %v1416
    %1446 = vmatpush.msra.mxu0 %v1415
    %1447 = vmatpush.msra.mxu0 %v1414
    %1448 = vmatpush.msra.mxu0 %v1413
    %1449 = vmatmul.f32.gmra.mxu0 %v1411
    %v1450 = vpop.f32.mrf.mxu0
    %v1451 = vadd.f32 %v1431, %v1450
    %1452 = vdwg.mxu0
    %1453 = vst [vmem:[#allocation2] sm:$0x3] %v1451
    // Predicated region
    $region38: #{cnnnet_forward.5} parent=1 // pred_check
      _
    $region39: #{cnnnet_forward.5} parent=1 // pred_check_branch
      %1455 = sbr.rel (0) target = $region41
    $region40: #{cnnnet_forward.5} parent=1 // pred_region
      %1457 = vsyncadd [#allocation3], 0
      %s1459 = sshll.u32 [#allocation2], 4
      %s1460 = int_to_ptr.vmem [resolvable:$true] %s1459
      %s1461 = sshll.u32 %s9, 4
      %s1462 = int_to_ptr.hbm [resolvable:$true] %s1461
      %1464 = dma.vmem_to_hbm [thread:$0]  %s1460, 32, %s1462, [#allocation3]
    $region41: #{cnnnet_forward.5} parent=1 // pred_fallthru
      _
    // Predicated region
    $region42: #{cnnnet_forward.5} parent=1 // pred_check
      _
    $region43: #{cnnnet_forward.5} parent=1 // pred_check_branch
      %1466 = sbr.rel (0) target = $region45
    $region44: #{cnnnet_forward.5} parent=1 // pred_region
      %1468 = dma.done [#allocation3], 32
    $region45: #{cnnnet_forward.5} parent=1 // pred_fallthru
      _
    %1469 = vsyncpa [#allocation3], 1

</llo_original>
